<compile_context>
chip_gen: v6e
topology: v6e:2x2x1
jax: 0.10.0
libtpu: 0.0.40
codegen_flags: <defaults>
</compile_context>

<pallas_src>
import functools

import jax
import jax.numpy as jnp
import numpy as np
from jax import lax
from jax.experimental import pallas as pl
from jax.experimental.pallas import tpu as pltpu

KSIZE = 3
GN_EPS = 1e-5


def _mish(x):
    # exact mish (wrapper / reference): x * tanh(softplus(x)), stable softplus
    sp = jnp.maximum(x, 0.0) + jnp.log1p(jnp.exp(-jnp.abs(x)))
    return x * jnp.tanh(sp)


def _mish_fast(x):
    # kernel-side mish, algebraically identical but with ONE transcendental:
    #   tanh(softplus(x)) = u / (u + 2),   u = e^x (e^x + 2)
    # the divide goes to the EUP via an approximate reciprocal; large x passes
    # through (mish(x) ~= x for x > 20, exp argument clamped to stay finite).
    e = jnp.exp(jnp.minimum(x, 20.0))
    u = e * (e + 2.0)
    t = u * pl.reciprocal(u + 2.0, approx=True)
    return jnp.where(x > 20.0, x, x * t)


@functools.lru_cache(maxsize=None)
def _roll_convention():
    """Probe pltpu.roll on the sublane axis.

    Returns +1 if pltpu.roll(x, 1, axis=0)[i] == x[i-1] (jnp.roll convention),
    -1 if the direction is reversed, 0 if the op is unavailable (then the kernel
    falls back to jnp.roll)."""
    def k(x_ref, o_ref):
        o_ref[...] = pltpu.roll(x_ref[...], 1, axis=0)

    try:
        with jax.ensure_compile_time_eval():
            x = jnp.arange(8 * 128, dtype=jnp.float32).reshape(8, 128)
            y = pl.pallas_call(
                k, out_shape=jax.ShapeDtypeStruct((8, 128), jnp.float32))(x)
            return 1 if bool(y[1, 0] == x[0, 0]) else -1
    except Exception:
        return 0


# --------------------------------------------------------------------------
# Pallas kernel
# --------------------------------------------------------------------------
def make_kernel(T, Cin, Cout, Bt, cps, use_res_conv, roll_conv):
    M = Bt * T

    def roll_rows(p, shift):
        # result[r] = p[r - shift]; the wrapped-around rows are masked by caller.
        if roll_conv == 0:
            return jnp.roll(p, shift, axis=0)   # fallback (slice+concat lowering)
        return pltpu.roll(p, (roll_conv * shift) % M, axis=0)

    def conv3(xb, w_ref, b_row, not_first, not_last):
        # k=3 "same" conv: 3 unshifted matmuls on the SAME bf16 LHS; the f32
        # results are shifted by one row with XLU rolls and masked at element
        # boundaries (no padded scratch, no unaligned sublane slices).
        p0 = jnp.dot(xb, w_ref[0], preferred_element_type=jnp.float32)
        p1 = jnp.dot(xb, w_ref[1], preferred_element_type=jnp.float32)
        p2 = jnp.dot(xb, w_ref[2], preferred_element_type=jnp.float32)
        return (roll_rows(p0, 1) * not_first + p1
                + roll_rows(p2, -1) * not_last + b_row)

    def gn_stats(y, gsum, gbc):
        # per-(element, group) mean / E[x^2]: sublane sums over T, then tiny
        # factorized group-mix matmuls instead of a dense (Cout,Cout) average.
        yr = y.reshape(Bt, T, Cout)
        s = jnp.sum(yr, axis=1)                       # (Bt, Cout)
        q = jnp.sum(yr * yr, axis=1)                  # (Bt, Cout)

        def gmix(v):
            return jnp.dot(jnp.dot(v, gsum, preferred_element_type=jnp.float32),
                           gbc, preferred_element_type=jnp.float32)

        mean = gmix(s)
        ex2 = gmix(q)
        # NOTE: E[x^2]-E[x]^2 (clamped >= 0) is slightly less stable than the
        # centered two-pass form but fine at these activation scales.
        inv = lax.rsqrt(jnp.maximum(ex2 - mean * mean, 0.0) + GN_EPS)
        return mean, inv

    def kernel(*refs):
        it = iter(refs)
        x_ref = next(it)                              # (M, Cin)   bf16 channels-last
        scale_ref = next(it) if cps else None         # (Bt, Cout) f32 FiLM scale
        bias_ref = next(it)                           # (Bt, Cout) f32 FiLM bias
        w1_ref = next(it)                             # (3, Cin, Cout)  bf16
        b1_ref = next(it); g1_ref = next(it); be1_ref = next(it)   # (1, Cout) f32
        w2_ref = next(it)                             # (3, Cout, Cout) bf16
        b2_ref = next(it); g2_ref = next(it); be2_ref = next(it)   # (1, Cout) f32
        if use_res_conv:
            wr_ref = next(it)                         # (Cin, Cout) bf16
            br_ref = next(it)                         # (1, Cout)   f32
        gsum_ref = next(it)                           # (Cout, G) f32
        gbc_ref = next(it)                            # (G, Cout) f32
        o_ref = next(it)                              # (M, Cout)

        # element-boundary masks: zero conv taps that would read across batch
        # elements (rows with t == 0 / t == T-1 inside each element)
        tmod = lax.broadcasted_iota(jnp.int32, (M, 1), 0) % T
        not_first = (tmod != 0).astype(jnp.float32)
        not_last = (tmod != T - 1).astype(jnp.float32)

        xb = x_ref[...]
        gsum = gsum_ref[...]
        gbc = gbc_ref[...]

        # ---- blocks[0]: Conv1d(k=3, pad=1) -> GroupNorm -> Mish -> FiLM ----
        y1 = conv3(xb, w1_ref, b1_ref[...], not_first, not_last)     # (M, Cout) f32
        mean1, inv1 = gn_stats(y1, gsum, gbc)
        aff_s1 = inv1 * g1_ref[...]                                  # (Bt, Cout)
        aff_b1 = be1_ref[...] - mean1 * aff_s1
        h = _mish_fast(y1.reshape(Bt, T, Cout) * aff_s1[:, None, :]
                       + aff_b1[:, None, :])
        if cps:
            h = h * scale_ref[...][:, None, :] + bias_ref[...][:, None, :]
        else:
            h = h + bias_ref[...][:, None, :]
        hb = h.reshape(M, Cout).astype(jnp.bfloat16)                 # bf16 MXU input

        # ---- blocks[1]: Conv1d(k=3, pad=1) -> GroupNorm -> Mish ----
        y2 = conv3(hb, w2_ref, b2_ref[...], not_first, not_last)
        mean2, inv2 = gn_stats(y2, gsum, gbc)
        aff_s2 = inv2 * g2_ref[...]
        aff_b2 = be2_ref[...] - mean2 * aff_s2
        h2 = _mish_fast(y2.reshape(Bt, T, Cout) * aff_s2[:, None, :]
                        + aff_b2[:, None, :])

        # ---- residual branch: 1x1 conv (Cin != Cout) or identity ----
        if use_res_conv:
            res = jnp.dot(xb, wr_ref[...],
                          preferred_element_type=jnp.float32) + br_ref[...]
        else:
            res = xb.astype(jnp.float32)

        o_ref[...] = (h2.reshape(M, Cout) + res).astype(o_ref.dtype)

    return kernel


# --------------------------------------------------------------------------
# Wrapper
# --------------------------------------------------------------------------
def cond_res_block_pallas(x, cond, params, *, n_groups, cond_predict_scale,
                          batch_tile=16):
    """x: (B, Cin, T), cond: (B, cond_dim) -> (B, Cout, T).

    batch_tile: batch elements per grid step (M = batch_tile*T matmul rows).
    Use 16 on v6e/v7x (fills the 256-wide MXU), 8 on v5e (128-wide MXU).
    """
    B, Cin, T = x.shape
    Cout = params['w1'].shape[2]
    G = n_groups
    Cg = Cout // G
    use_res_conv = (Cin != Cout)
    cps = bool(cond_predict_scale)

    Bt = B if B <= batch_tile else batch_tile
    Bp = ((B + Bt - 1) // Bt) * Bt
    nsteps = Bp // Bt
    M = Bt * T

    # channels-last bf16 activations (native MXU dtype, halves activation DMA).
    # TODO(synk): when chaining blocks in a U-Net keep activations channels-last
    # (and bf16) between blocks so this transpose and the output one disappear.
    xt = jnp.transpose(x, (0, 2, 1))
    if Bp != B:
        xt = jnp.pad(xt, ((0, Bp - B), (0, 0), (0, 0)))
    xb = xt.reshape(Bp * T, Cin).astype(jnp.bfloat16)

    # FiLM cond encoder hoisted out of the kernel (one f32 matmul)
    e = (_mish(cond.astype(jnp.float32)) @ params['wc'].astype(jnp.float32)
         + params['bc'].astype(jnp.float32))
    if cps:
        scale_b, bias_b = e[:, :Cout], e[:, Cout:]
    else:
        scale_b, bias_b = None, e
    if Bp != B:
        bias_b = jnp.pad(bias_b, ((0, Bp - B), (0, 0)))
        if cps:
            scale_b = jnp.pad(scale_b, ((0, Bp - B), (0, 0)))

    # factorized GroupNorm averaging: (Cout,G) pre-scaled sum + (G,Cout) broadcast
    gid = jnp.arange(Cout) // Cg
    gsum = (gid[:, None] == jnp.arange(G)[None, :]).astype(jnp.float32) / float(T * Cg)
    gbc = (jnp.arange(G)[:, None] == gid[None, :]).astype(jnp.float32)

    row = lambda v: v.reshape(1, -1).astype(jnp.float32)
    bfc = lambda v: v.astype(jnp.bfloat16)

    kernel = make_kernel(T, Cin, Cout, Bt, cps, use_res_conv, _roll_convention())

    def full(shape):
        nd = len(shape)
        return pl.BlockSpec(shape, lambda i: (0,) * nd)

    # TODO(synk): at very wide Cout on v7x (64 MiB VMEM) add
    # pipeline_mode=pl.Buffered(1) to the constant weight specs below so they are
    # not double-buffered (API availability varies across jax versions).
    in_specs = [pl.BlockSpec((M, Cin), lambda i: (i, 0))]
    args = [xb]
    if cps:
        in_specs.append(pl.BlockSpec((Bt, Cout), lambda i: (i, 0)))
        args.append(scale_b)
    in_specs.append(pl.BlockSpec((Bt, Cout), lambda i: (i, 0)))
    args.append(bias_b)

    in_specs += [full((KSIZE, Cin, Cout)), full((1, Cout)), full((1, Cout)), full((1, Cout)),
                 full((KSIZE, Cout, Cout)), full((1, Cout)), full((1, Cout)), full((1, Cout))]
    args += [bfc(params['w1']), row(params['b1']), row(params['gn1_g']), row(params['gn1_b']),
             bfc(params['w2']), row(params['b2']), row(params['gn2_g']), row(params['gn2_b'])]
    if use_res_conv:
        in_specs += [full((Cin, Cout)), full((1, Cout))]
        args += [bfc(params['wr']), row(params['br'])]
    in_specs += [full((Cout, G)), full((G, Cout))]
    args += [gsum, gbc]

    grid_spec = pltpu.PrefetchScalarGridSpec(
        num_scalar_prefetch=0,
        grid=(nsteps,),
        in_specs=in_specs,
        out_specs=pl.BlockSpec((M, Cout), lambda i: (i, 0)),
    )

    out_flat = pl.pallas_call(
        kernel,
        out_shape=jax.ShapeDtypeStruct((Bp * T, Cout), x.dtype),
        grid_spec=grid_spec,
        compiler_params=pltpu.CompilerParams(
            dimension_semantics=("parallel",),      # batch blocks are independent
            vmem_limit_bytes=64 * 1024 * 1024,
        ),
    )(*args)

    out = out_flat.reshape(Bp, T, Cout)[:B]
    return jnp.transpose(out, (0, 2, 1))                              # (B, Cout, T)


# --------------------------------------------------------------------------
# Pure-JAX reference (mirrors the PyTorch module, NCW layout)
# --------------------------------------------------------------------------
def ref_forward(x, cond, params, *, n_groups, cond_predict_scale):
    Cout = params['w1'].shape[2]

    def conv1d(xin, w, b, pad):
        B, Ci, T = xin.shape
        K, _, Co = w.shape
        xp = jnp.pad(xin, ((0, 0), (0, 0), (pad, pad)))
        y = jnp.zeros((B, Co, T), jnp.float32)
        for k in range(K):
            y = y + jnp.einsum('bit,io->bot', xp[:, :, k:k + T], w[k])
        return y + b[None, :, None]

    def groupnorm(y, gamma, beta, G):
        B, C, T = y.shape
        yg = y.reshape(B, G, C // G, T)
        mean = yg.mean(axis=(2, 3), keepdims=True)
        var = ((yg - mean) ** 2).mean(axis=(2, 3), keepdims=True)
        yn = ((yg - mean) / jnp.sqrt(var + GN_EPS)).reshape(B, C, T)
        return yn * gamma[None, :, None] + beta[None, :, None]

    h = _mish(groupnorm(conv1d(x, params['w1'], params['b1'], 1),
                        params['gn1_g'], params['gn1_b'], n_groups))
    e = _mish(cond) @ params['wc'] + params['bc']
    if cond_predict_scale:
        e = e.reshape(e.shape[0], 2, Cout, 1)
        h = e[:, 0] * h + e[:, 1]
    else:
        h = h + e[:, :, None]
    h = _mish(groupnorm(conv1d(h, params['w2'], params['b2'], 1),
                        params['gn2_g'], params['gn2_b'], n_groups))
    if x.shape[1] != Cout:
        res = jnp.einsum('bit,io->bot', x, params['wr']) + params['br'][None, :, None]
    else:
        res = x
    return h + res


# --------------------------------------------------------------------------
# Deterministic synthetic parameters
# --------------------------------------------------------------------------
def init_params(key, Cin, Cout, cond_dim, cond_predict_scale):
    ks = jax.random.split(key, 12)
    cond_ch = 2 * Cout if cond_predict_scale else Cout
    s = 0.1
    p = dict(
        w1=jax.random.normal(ks[0], (KSIZE, Cin, Cout), jnp.float32) * s,
        b1=jax.random.normal(ks[1], (Cout,), jnp.float32) * s,
        gn1_g=1.0 + jax.random.normal(ks[2], (Cout,), jnp.float32) * s,
        gn1_b=jax.random.normal(ks[3], (Cout,), jnp.float32) * s,
        w2=jax.random.normal(ks[4], (KSIZE, Cout, Cout), jnp.float32) * s,
        b2=jax.random.normal(ks[5], (Cout,), jnp.float32) * s,
        gn2_g=1.0 + jax.random.normal(ks[6], (Cout,), jnp.float32) * s,
        gn2_b=jax.random.normal(ks[7], (Cout,), jnp.float32) * s,
        wc=jax.random.normal(ks[8], (cond_dim, cond_ch), jnp.float32) * s,
        bc=jax.random.normal(ks[9], (cond_ch,), jnp.float32) * s,
    )
    if Cin != Cout:
        p['wr'] = jax.random.normal(ks[10], (Cin, Cout), jnp.float32) * s
        p['br'] = jax.random.normal(ks[11], (Cout,), jnp.float32) * s
    else:
        p['wr'] = jnp.zeros((Cin, Cout), jnp.float32)   # unused (identity residual)
        p['br'] = jnp.zeros((Cout,), jnp.float32)
    return p


if __name__ == "__main__":
    key = jax.random.PRNGKey(0)
    configs = [
        # (B, Cin, Cout, cond_dim, T, n_groups, cond_predict_scale)
        dict(B=2, Cin=8, Cout=16, cond_dim=32, T=16, G=8, cps=True),    # 1x1 residual conv
        dict(B=2, Cin=16, Cout=16, cond_dim=32, T=16, G=8, cps=False),  # identity residual
    ]
    for cfg in configs:
        key, k1, k2, k3 = jax.random.split(key, 4)
        x = jax.random.normal(k1, (cfg['B'], cfg['Cin'], cfg['T']), jnp.float32)
        cond = jax.random.normal(k2, (cfg['B'], cfg['cond_dim']), jnp.float32)
        params = init_params(k3, cfg['Cin'], cfg['Cout'], cfg['cond_dim'], cfg['cps'])

        out = cond_res_block_pallas(x, cond, params,
                                    n_groups=cfg['G'], cond_predict_scale=cfg['cps'])
        out = np.asarray(jax.block_until_ready(out))

        # exact f32 reference (loose tolerance: the kernel runs the MXU in bf16)
        ref = ref_forward(x, cond, params,
                          n_groups=cfg['G'], cond_predict_scale=cfg['cps'])
        np.testing.assert_allclose(out, np.asarray(ref), rtol=1e-1, atol=1e-1)

        # bf16-quantization-aware reference (tight tolerance: validates structure)
        q = lambda a: a.astype(jnp.bfloat16).astype(jnp.float32)
        params_q = dict(params)
        params_q.update(w1=q(params['w1']), w2=q(params['w2']), wr=q(params['wr']))
        ref_q = ref_forward(q(x), cond, params_q,
                            n_groups=cfg['G'], cond_predict_scale=cfg['cps'])
        np.testing.assert_allclose(out, np.asarray(ref_q), rtol=3e-2, atol=3e-2)

    print("KERNEL_OK")
</pallas_src>

<mosaic_0001>
module attributes {stable_mosaic.version = 11 : i64} {
  func.func @k(%arg0: memref<8x128xf32, #tpu.memory_space<vmem>>, %arg1: memref<8x128xf32, #tpu.memory_space<vmem>>) attributes {dimension_semantics = [], scalar_prefetch = 0 : i64, scratch_operands = 0 : i64, tpu.core_type = #tpu.core_type<tc>} {
    %c0 = arith.constant 0 : index
    %c0_0 = arith.constant 0 : index
    %0 = vector.load %arg0[%c0, %c0_0] : memref<8x128xf32, #tpu.memory_space<vmem>>, vector<8x128xf32>
    %c1_i32 = arith.constant 1 : i32
    %1 = tpu.dynamic_rotate %0 by %c1_i32 dim 0 : vector<8x128xf32>, i32 -> vector<8x128xf32>
    %c0_1 = arith.constant 0 : index
    %c0_2 = arith.constant 0 : index
    %2 = vector.load %arg1[%c0_1, %c0_2] : memref<8x128xf32, #tpu.memory_space<vmem>>, vector<8x128xf32>
    tpu.vector_store %arg1[%c0_1, %c0_2], %1 {strides = array<i32>} : memref<8x128xf32, #tpu.memory_space<vmem>>, vector<8x128xf32>,
    return
  }
}

module attributes {stable_mosaic.version = 11 : i64} {
  func.func @kernel(%arg0: i32, %arg1: memref<32x8xbf16, #tpu.memory_space<vmem>>, %arg2: memref<2x16xf32, #tpu.memory_space<vmem>>, %arg3: memref<2x16xf32, #tpu.memory_space<vmem>>, %arg4: memref<3x8x16xbf16, #tpu.memory_space<vmem>>, %arg5: memref<1x16xf32, #tpu.memory_space<vmem>>, %arg6: memref<1x16xf32, #tpu.memory_space<vmem>>, %arg7: memref<1x16xf32, #tpu.memory_space<vmem>>, %arg8: memref<3x16x16xbf16, #tpu.memory_space<vmem>>, %arg9: memref<1x16xf32, #tpu.memory_space<vmem>>, %arg10: memref<1x16xf32, #tpu.memory_space<vmem>>, %arg11: memref<1x16xf32, #tpu.memory_space<vmem>>, %arg12: memref<8x16xbf16, #tpu.memory_space<vmem>>, %arg13: memref<1x16xf32, #tpu.memory_space<vmem>>, %arg14: memref<16x8xf32, #tpu.memory_space<vmem>>, %arg15: memref<8x16xf32, #tpu.memory_space<vmem>>, %arg16: memref<32x16xf32, #tpu.memory_space<vmem>>) attributes {dimension_semantics = [#tpu.dimension_semantics<parallel>], iteration_bounds = array<i64: 1>, scalar_prefetch = 0 : i64, scratch_operands = 0 : i64, tpu.core_type = #tpu.core_type<tc>, window_params = [{transform_indices = @transform_0, window_bounds = array<i64: 32, 8>}, {transform_indices = @transform_1, window_bounds = array<i64: 2, 16>}, {transform_indices = @transform_2, window_bounds = array<i64: 2, 16>}, {pipeline_mode = #tpu.pipeline_mode<synchronous>, transform_indices = @transform_3, window_bounds = array<i64: 3, 8, 16>}, {pipeline_mode = #tpu.pipeline_mode<synchronous>, transform_indices = @transform_4, window_bounds = array<i64: 1, 16>}, {pipeline_mode = #tpu.pipeline_mode<synchronous>, transform_indices = @transform_5, window_bounds = array<i64: 1, 16>}, {pipeline_mode = #tpu.pipeline_mode<synchronous>, transform_indices = @transform_6, window_bounds = array<i64: 1, 16>}, {pipeline_mode = #tpu.pipeline_mode<synchronous>, transform_indices = @transform_7, window_bounds = array<i64: 3, 16, 16>}, {pipeline_mode = #tpu.pipeline_mode<synchronous>, transform_indices = @transform_8, window_bounds = array<i64: 1, 16>}, {pipeline_mode = #tpu.pipeline_mode<synchronous>, transform_indices = @transform_9, window_bounds = array<i64: 1, 16>}, {pipeline_mode = #tpu.pipeline_mode<synchronous>, transform_indices = @transform_10, window_bounds = array<i64: 1, 16>}, {pipeline_mode = #tpu.pipeline_mode<synchronous>, transform_indices = @transform_11, window_bounds = array<i64: 8, 16>}, {pipeline_mode = #tpu.pipeline_mode<synchronous>, transform_indices = @transform_12, window_bounds = array<i64: 1, 16>}, {pipeline_mode = #tpu.pipeline_mode<synchronous>, transform_indices = @transform_13, window_bounds = array<i64: 16, 8>}, {pipeline_mode = #tpu.pipeline_mode<synchronous>, transform_indices = @transform_14, window_bounds = array<i64: 8, 16>}, {transform_indices = @transform_15, window_bounds = array<i64: 32, 16>}]} {
    %0 = tpu.iota {dimensions = array<i32: 0>} : vector<32x1xi32>
    %c16_i32 = arith.constant 16 : i32
    %c0_i32 = arith.constant 0 : i32
    %1 = arith.cmpi eq, %c16_i32, %c0_i32 : i32
    %c1_i32 = arith.constant 1 : i32
    %2 = arith.select %1, %c1_i32, %c16_i32 : i32
    %3 = vector.broadcast %2 : i32 to vector<32x1xi32>
    %4 = arith.remsi %0, %3 : vector<32x1xi32>
    %c0_i32_0 = arith.constant 0 : i32
    %5 = vector.broadcast %c0_i32_0 : i32 to vector<32x1xi32>
    %6 = arith.cmpi ne, %4, %5 : vector<32x1xi32>
    %c0_i32_1 = arith.constant 0 : i32
    %7 = vector.broadcast %c0_i32_1 : i32 to vector<32x1xi32>
    %8 = arith.cmpi slt, %4, %7 : vector<32x1xi32>
    %c0_i32_2 = arith.constant 0 : i32
    %9 = arith.cmpi slt, %2, %c0_i32_2 : i32
    %10 = vector.broadcast %9 : i1 to vector<32x1xi1>
    %11 = vector.broadcast %10 : vector<32x1xi1> to vector<32x1xi1>
    %12 = arith.xori %8, %11 : vector<32x1xi1>
    %13 = arith.andi %12, %6 : vector<32x1xi1>
    %14 = vector.broadcast %2 : i32 to vector<32x1xi32>
    %15 = arith.addi %4, %14 : vector<32x1xi32>
    %16 = arith.select %13, %15, %4 : vector<32x1xi1>, vector<32x1xi32>
    %c0_i32_3 = arith.constant 0 : i32
    %17 = vector.broadcast %c0_i32_3 : i32 to vector<32x1xi32>
    %18 = arith.cmpi ne, %16, %17 : vector<32x1xi32>
    %19 = arith.extui %18 : vector<32x1xi1> to vector<32x1xi32>
    %20 = arith.sitofp %19 : vector<32x1xi32> to vector<32x1xf32>
    %c15_i32 = arith.constant 15 : i32
    %21 = vector.broadcast %c15_i32 : i32 to vector<32x1xi32>
    %22 = arith.cmpi ne, %16, %21 : vector<32x1xi32>
    %23 = arith.extui %22 : vector<32x1xi1> to vector<32x1xi32>
    %24 = arith.sitofp %23 : vector<32x1xi32> to vector<32x1xf32>
    %c0 = arith.constant 0 : index
    %c0_4 = arith.constant 0 : index
    %25 = vector.load %arg1[%c0, %c0_4] : memref<32x8xbf16, #tpu.memory_space<vmem>>, vector<32x8xbf16>
    %c0_5 = arith.constant 0 : index
    %c0_6 = arith.constant 0 : index
    %26 = vector.load %arg14[%c0_5, %c0_6] : memref<16x8xf32, #tpu.memory_space<vmem>>, vector<16x8xf32>
    %c0_7 = arith.constant 0 : index
    %c0_8 = arith.constant 0 : index
    %27 = vector.load %arg15[%c0_7, %c0_8] : memref<8x16xf32, #tpu.memory_space<vmem>>, vector<8x16xf32>
    %c0_9 = arith.constant 0 : index
    %c0_10 = arith.constant 0 : index
    %28 = vector.load %arg5[%c0_9, %c0_10] : memref<1x16xf32, #tpu.memory_space<vmem>>, vector<1x16xf32>
    %c0_11 = arith.constant 0 : index
    %c0_12 = arith.constant 0 : index
    %c0_13 = arith.constant 0 : index
    %29 = vector.load %arg4[%c0_11, %c0_12, %c0_13] : memref<3x8x16xbf16, #tpu.memory_space<vmem>>, vector<1x8x16xbf16>
    %30 = vector.shape_cast %29 : vector<1x8x16xbf16> to vector<8x16xbf16>
    %cst = arith.constant dense<0.000000e+00> : vector<32x16xf32>
    %31 = tpu.matmul %25, %30, %cst {dimension_numbers = #tpu.dot_dimension_numbers<[1], [0], [0], [1], [0, 0, 1, 1], [], []>} : vector<32x8xbf16>, vector<8x16xbf16>, vector<32x16xf32> -> vector<32x16xf32>
    %c1 = arith.constant 1 : index
    %c0_14 = arith.constant 0 : index
    %c0_15 = arith.constant 0 : index
    %32 = vector.load %arg4[%c1, %c0_14, %c0_15] : memref<3x8x16xbf16, #tpu.memory_space<vmem>>, vector<1x8x16xbf16>
    %33 = vector.shape_cast %32 : vector<1x8x16xbf16> to vector<8x16xbf16>
    %cst_16 = arith.constant dense<0.000000e+00> : vector<32x16xf32>
    %34 = tpu.matmul %25, %33, %cst_16 {dimension_numbers = #tpu.dot_dimension_numbers<[1], [0], [0], [1], [0, 0, 1, 1], [], []>} : vector<32x8xbf16>, vector<8x16xbf16>, vector<32x16xf32> -> vector<32x16xf32>
    %c2 = arith.constant 2 : index
    %c0_17 = arith.constant 0 : index
    %c0_18 = arith.constant 0 : index
    %35 = vector.load %arg4[%c2, %c0_17, %c0_18] : memref<3x8x16xbf16, #tpu.memory_space<vmem>>, vector<1x8x16xbf16>
    %36 = vector.shape_cast %35 : vector<1x8x16xbf16> to vector<8x16xbf16>
    %cst_19 = arith.constant dense<0.000000e+00> : vector<32x16xf32>
    %37 = tpu.matmul %25, %36, %cst_19 {dimension_numbers = #tpu.dot_dimension_numbers<[1], [0], [0], [1], [0, 0, 1, 1], [], []>} : vector<32x8xbf16>, vector<8x16xbf16>, vector<32x16xf32> -> vector<32x16xf32>
    %38 = vector.extract_strided_slice %31 {offsets = [31, 0], sizes = [1, 16], strides = [1, 1]} : vector<32x16xf32> to vector<1x16xf32>
    %39 = vector.extract_strided_slice %31 {offsets = [0, 0], sizes = [31, 16], strides = [1, 1]} : vector<32x16xf32> to vector<31x16xf32>
    %40 = tpu.concatenate %38, %39 in 0 : vector<1x16xf32>, vector<31x16xf32> -> vector<32x16xf32>
    %41 = vector.broadcast %20 : vector<32x1xf32> to vector<32x16xf32>
    %42 = arith.mulf %40, %41 : vector<32x16xf32>
    %43 = arith.addf %42, %34 : vector<32x16xf32>
    %44 = vector.extract_strided_slice %37 {offsets = [1, 0], sizes = [31, 16], strides = [1, 1]} : vector<32x16xf32> to vector<31x16xf32>
    %45 = vector.extract_strided_slice %37 {offsets = [0, 0], sizes = [1, 16], strides = [1, 1]} : vector<32x16xf32> to vector<1x16xf32>
    %46 = tpu.concatenate %44, %45 in 0 : vector<31x16xf32>, vector<1x16xf32> -> vector<32x16xf32>
    %47 = vector.broadcast %24 : vector<32x1xf32> to vector<32x16xf32>
    %48 = arith.mulf %46, %47 : vector<32x16xf32>
    %49 = arith.addf %43, %48 : vector<32x16xf32>
    %50 = vector.broadcast %28 : vector<1x16xf32> to vector<32x16xf32>
    %51 = arith.addf %49, %50 : vector<32x16xf32>
    %52 = vector.shape_cast %51 : vector<32x16xf32> to vector<2x16x16xf32>
    %cst_20 = arith.constant dense<0.000000e+00> : vector<2x16xf32>
    %53 = vector.multi_reduction <add>, %52, %cst_20 [1] : vector<2x16x16xf32> to vector<2x16xf32>
    %54 = arith.mulf %52, %52 : vector<2x16x16xf32>
    %cst_21 = arith.constant dense<0.000000e+00> : vector<2x16xf32>
    %55 = vector.multi_reduction <add>, %54, %cst_21 [1] : vector<2x16x16xf32> to vector<2x16xf32>
    %cst_22 = arith.constant dense<0.000000e+00> : vector<2x8xf32>
    %56 = tpu.matmul %53, %26, %cst_22 {dimension_numbers = #tpu.dot_dimension_numbers<[1], [0], [0], [1], [0, 0, 1, 1], [], []>} : vector<2x16xf32>, vector<16x8xf32>, vector<2x8xf32> -> vector<2x8xf32>
    %cst_23 = arith.constant dense<0.000000e+00> : vector<2x16xf32>
    %57 = tpu.matmul %56, %27, %cst_23 {dimension_numbers = #tpu.dot_dimension_numbers<[1], [0], [0], [1], [0, 0, 1, 1], [], []>} : vector<2x8xf32>, vector<8x16xf32>, vector<2x16xf32> -> vector<2x16xf32>
    %cst_24 = arith.constant dense<0.000000e+00> : vector<2x8xf32>
    %58 = tpu.matmul %55, %26, %cst_24 {dimension_numbers = #tpu.dot_dimension_numbers<[1], [0], [0], [1], [0, 0, 1, 1], [], []>} : vector<2x16xf32>, vector<16x8xf32>, vector<2x8xf32> -> vector<2x8xf32>
    %cst_25 = arith.constant dense<0.000000e+00> : vector<2x16xf32>
    %59 = tpu.matmul %58, %27, %cst_25 {dimension_numbers = #tpu.dot_dimension_numbers<[1], [0], [0], [1], [0, 0, 1, 1], [], []>} : vector<2x8xf32>, vector<8x16xf32>, vector<2x16xf32> -> vector<2x16xf32>
    %60 = arith.mulf %57, %57 : vector<2x16xf32>
    %61 = arith.subf %59, %60 : vector<2x16xf32>
    %cst_26 = arith.constant 0.000000e+00 : f32
    %62 = vector.broadcast %cst_26 : f32 to vector<2x16xf32>
    %63 = arith.maximumf %61, %62 : vector<2x16xf32>
    %cst_27 = arith.constant 9.99999974E-6 : f32
    %64 = vector.broadcast %cst_27 : f32 to vector<2x16xf32>
    %65 = arith.addf %63, %64 : vector<2x16xf32>
    %66 = math.rsqrt %65 : vector<2x16xf32>
    %c0_28 = arith.constant 0 : index
    %c0_29 = arith.constant 0 : index
    %67 = vector.load %arg6[%c0_28, %c0_29] : memref<1x16xf32, #tpu.memory_space<vmem>>, vector<1x16xf32>
    %68 = vector.broadcast %67 : vector<1x16xf32> to vector<2x16xf32>
    %69 = arith.mulf %66, %68 : vector<2x16xf32>
    %c0_30 = arith.constant 0 : index
    %c0_31 = arith.constant 0 : index
    %70 = vector.load %arg7[%c0_30, %c0_31] : memref<1x16xf32, #tpu.memory_space<vmem>>, vector<1x16xf32>
    %71 = arith.mulf %57, %69 : vector<2x16xf32>
    %72 = vector.broadcast %70 : vector<1x16xf32> to vector<2x16xf32>
    %73 = arith.subf %72, %71 : vector<2x16xf32>
    %74 = vector.shape_cast %51 : vector<32x16xf32> to vector<2x16x16xf32>
    %75 = vector.shape_cast %69 : vector<2x16xf32> to vector<2x1x16xf32>
    %76 = vector.broadcast %75 : vector<2x1x16xf32> to vector<2x16x16xf32>
    %77 = arith.mulf %74, %76 : vector<2x16x16xf32>
    %78 = vector.shape_cast %73 : vector<2x16xf32> to vector<2x1x16xf32>
    %79 = vector.broadcast %78 : vector<2x1x16xf32> to vector<2x16x16xf32>
    %80 = arith.addf %77, %79 : vector<2x16x16xf32>
    %cst_32 = arith.constant 2.000000e+01 : f32
    %81 = vector.broadcast %cst_32 : f32 to vector<2x16x16xf32>
    %82 = arith.minimumf %80, %81 : vector<2x16x16xf32>
    %83 = math.exp %82 : vector<2x16x16xf32>
    %cst_33 = arith.constant 2.000000e+00 : f32
    %84 = vector.broadcast %cst_33 : f32 to vector<2x16x16xf32>
    %85 = arith.addf %83, %84 : vector<2x16x16xf32>
    %86 = arith.mulf %83, %85 : vector<2x16x16xf32>
    %cst_34 = arith.constant 2.000000e+00 : f32
    %87 = vector.broadcast %cst_34 : f32 to vector<2x16x16xf32>
    %88 = arith.addf %86, %87 : vector<2x16x16xf32>
    %89 = tpu.reciprocal %88 {approx = true} : vector<2x16x16xf32> -> vector<2x16x16xf32>
    %90 = arith.mulf %86, %89 : vector<2x16x16xf32>
    %cst_35 = arith.constant 2.000000e+01 : f32
    %91 = vector.broadcast %cst_35 : f32 to vector<2x16x16xf32>
    %92 = arith.cmpf ogt, %80, %91 : vector<2x16x16xf32>
    %93 = arith.mulf %80, %90 : vector<2x16x16xf32>
    %94 = arith.select %92, %80, %93 : vector<2x16x16xi1>, vector<2x16x16xf32>
    %c0_36 = arith.constant 0 : index
    %c0_37 = arith.constant 0 : index
    %95 = vector.load %arg2[%c0_36, %c0_37] : memref<2x16xf32, #tpu.memory_space<vmem>>, vector<2x16xf32>
    %96 = vector.shape_cast %95 : vector<2x16xf32> to vector<2x1x16xf32>
    %97 = vector.broadcast %96 : vector<2x1x16xf32> to vector<2x16x16xf32>
    %98 = arith.mulf %94, %97 : vector<2x16x16xf32>
    %c0_38 = arith.constant 0 : index
    %c0_39 = arith.constant 0 : index
    %99 = vector.load %arg3[%c0_38, %c0_39] : memref<2x16xf32, #tpu.memory_space<vmem>>, vector<2x16xf32>
    %100 = vector.shape_cast %99 : vector<2x16xf32> to vector<2x1x16xf32>
    %101 = vector.broadcast %100 : vector<2x1x16xf32> to vector<2x16x16xf32>
    %102 = arith.addf %98, %101 : vector<2x16x16xf32>
    %103 = vector.shape_cast %102 : vector<2x16x16xf32> to vector<32x16xf32>
    %104 = arith.truncf %103 : vector<32x16xf32> to vector<32x16xbf16>
    %c0_40 = arith.constant 0 : index
    %c0_41 = arith.constant 0 : index
    %105 = vector.load %arg9[%c0_40, %c0_41] : memref<1x16xf32, #tpu.memory_space<vmem>>, vector<1x16xf32>
    %c0_42 = arith.constant 0 : index
    %c0_43 = arith.constant 0 : index
    %c0_44 = arith.constant 0 : index
    %106 = vector.load %arg8[%c0_42, %c0_43, %c0_44] : memref<3x16x16xbf16, #tpu.memory_space<vmem>>, vector<1x16x16xbf16>
    %107 = vector.shape_cast %106 : vector<1x16x16xbf16> to vector<16x16xbf16>
    %cst_45 = arith.constant dense<0.000000e+00> : vector<32x16xf32>
    %108 = tpu.matmul %104, %107, %cst_45 {dimension_numbers = #tpu.dot_dimension_numbers<[1], [0], [0], [1], [0, 0, 1, 1], [], []>} : vector<32x16xbf16>, vector<16x16xbf16>, vector<32x16xf32> -> vector<32x16xf32>
    %c1_46 = arith.constant 1 : index
    %c0_47 = arith.constant 0 : index
    %c0_48 = arith.constant 0 : index
    %109 = vector.load %arg8[%c1_46, %c0_47, %c0_48] : memref<3x16x16xbf16, #tpu.memory_space<vmem>>, vector<1x16x16xbf16>
    %110 = vector.shape_cast %109 : vector<1x16x16xbf16> to vector<16x16xbf16>
    %cst_49 = arith.constant dense<0.000000e+00> : vector<32x16xf32>
    %111 = tpu.matmul %104, %110, %cst_49 {dimension_numbers = #tpu.dot_dimension_numbers<[1], [0], [0], [1], [0, 0, 1, 1], [], []>} : vector<32x16xbf16>, vector<16x16xbf16>, vector<32x16xf32> -> vector<32x16xf32>
    %c2_50 = arith.constant 2 : index
    %c0_51 = arith.constant 0 : index
    %c0_52 = arith.constant 0 : index
    %112 = vector.load %arg8[%c2_50, %c0_51, %c0_52] : memref<3x16x16xbf16, #tpu.memory_space<vmem>>, vector<1x16x16xbf16>
    %113 = vector.shape_cast %112 : vector<1x16x16xbf16> to vector<16x16xbf16>
    %cst_53 = arith.constant dense<0.000000e+00> : vector<32x16xf32>
    %114 = tpu.matmul %104, %113, %cst_53 {dimension_numbers = #tpu.dot_dimension_numbers<[1], [0], [0], [1], [0, 0, 1, 1], [], []>} : vector<32x16xbf16>, vector<16x16xbf16>, vector<32x16xf32> -> vector<32x16xf32>
    %115 = vector.extract_strided_slice %108 {offsets = [31, 0], sizes = [1, 16], strides = [1, 1]} : vector<32x16xf32> to vector<1x16xf32>
    %116 = vector.extract_strided_slice %108 {offsets = [0, 0], sizes = [31, 16], strides = [1, 1]} : vector<32x16xf32> to vector<31x16xf32>
    %117 = tpu.concatenate %115, %116 in 0 : vector<1x16xf32>, vector<31x16xf32> -> vector<32x16xf32>
    %118 = vector.broadcast %20 : vector<32x1xf32> to vector<32x16xf32>
    %119 = arith.mulf %117, %118 : vector<32x16xf32>
    %120 = arith.addf %119, %111 : vector<32x16xf32>
    %121 = vector.extract_strided_slice %114 {offsets = [1, 0], sizes = [31, 16], strides = [1, 1]} : vector<32x16xf32> to vector<31x16xf32>
    %122 = vector.extract_strided_slice %114 {offsets = [0, 0], sizes = [1, 16], strides = [1, 1]} : vector<32x16xf32> to vector<1x16xf32>
    %123 = tpu.concatenate %121, %122 in 0 : vector<31x16xf32>, vector<1x16xf32> -> vector<32x16xf32>
    %124 = vector.broadcast %24 : vector<32x1xf32> to vector<32x16xf32>
    %125 = arith.mulf %123, %124 : vector<32x16xf32>
    %126 = arith.addf %120, %125 : vector<32x16xf32>
    %127 = vector.broadcast %105 : vector<1x16xf32> to vector<32x16xf32>
    %128 = arith.addf %126, %127 : vector<32x16xf32>
    %129 = vector.shape_cast %128 : vector<32x16xf32> to vector<2x16x16xf32>
    %cst_54 = arith.constant dense<0.000000e+00> : vector<2x16xf32>
    %130 = vector.multi_reduction <add>, %129, %cst_54 [1] : vector<2x16x16xf32> to vector<2x16xf32>
    %131 = arith.mulf %129, %129 : vector<2x16x16xf32>
    %cst_55 = arith.constant dense<0.000000e+00> : vector<2x16xf32>
    %132 = vector.multi_reduction <add>, %131, %cst_55 [1] : vector<2x16x16xf32> to vector<2x16xf32>
    %cst_56 = arith.constant dense<0.000000e+00> : vector<2x8xf32>
    %133 = tpu.matmul %130, %26, %cst_56 {dimension_numbers = #tpu.dot_dimension_numbers<[1], [0], [0], [1], [0, 0, 1, 1], [], []>} : vector<2x16xf32>, vector<16x8xf32>, vector<2x8xf32> -> vector<2x8xf32>
    %cst_57 = arith.constant dense<0.000000e+00> : vector<2x16xf32>
    %134 = tpu.matmul %133, %27, %cst_57 {dimension_numbers = #tpu.dot_dimension_numbers<[1], [0], [0], [1], [0, 0, 1, 1], [], []>} : vector<2x8xf32>, vector<8x16xf32>, vector<2x16xf32> -> vector<2x16xf32>
    %cst_58 = arith.constant dense<0.000000e+00> : vector<2x8xf32>
    %135 = tpu.matmul %132, %26, %cst_58 {dimension_numbers = #tpu.dot_dimension_numbers<[1], [0], [0], [1], [0, 0, 1, 1], [], []>} : vector<2x16xf32>, vector<16x8xf32>, vector<2x8xf32> -> vector<2x8xf32>
    %cst_59 = arith.constant dense<0.000000e+00> : vector<2x16xf32>
    %136 = tpu.matmul %135, %27, %cst_59 {dimension_numbers = #tpu.dot_dimension_numbers<[1], [0], [0], [1], [0, 0, 1, 1], [], []>} : vector<2x8xf32>, vector<8x16xf32>, vector<2x16xf32> -> vector<2x16xf32>
    %137 = arith.mulf %134, %134 : vector<2x16xf32>
    %138 = arith.subf %136, %137 : vector<2x16xf32>
    %cst_60 = arith.constant 0.000000e+00 : f32
    %139 = vector.broadcast %cst_60 : f32 to vector<2x16xf32>
    %140 = arith.maximumf %138, %139 : vector<2x16xf32>
    %cst_61 = arith.constant 9.99999974E-6 : f32
    %141 = vector.broadcast %cst_61 : f32 to vector<2x16xf32>
    %142 = arith.addf %140, %141 : vector<2x16xf32>
    %143 = math.rsqrt %142 : vector<2x16xf32>
    %c0_62 = arith.constant 0 : index
    %c0_63 = arith.constant 0 : index
    %144 = vector.load %arg10[%c0_62, %c0_63] : memref<1x16xf32, #tpu.memory_space<vmem>>, vector<1x16xf32>
    %145 = vector.broadcast %144 : vector<1x16xf32> to vector<2x16xf32>
    %146 = arith.mulf %143, %145 : vector<2x16xf32>
    %c0_64 = arith.constant 0 : index
    %c0_65 = arith.constant 0 : index
    %147 = vector.load %arg11[%c0_64, %c0_65] : memref<1x16xf32, #tpu.memory_space<vmem>>, vector<1x16xf32>
    %148 = arith.mulf %134, %146 : vector<2x16xf32>
    %149 = vector.broadcast %147 : vector<1x16xf32> to vector<2x16xf32>
    %150 = arith.subf %149, %148 : vector<2x16xf32>
    %151 = vector.shape_cast %128 : vector<32x16xf32> to vector<2x16x16xf32>
    %152 = vector.shape_cast %146 : vector<2x16xf32> to vector<2x1x16xf32>
    %153 = vector.broadcast %152 : vector<2x1x16xf32> to vector<2x16x16xf32>
    %154 = arith.mulf %151, %153 : vector<2x16x16xf32>
    %155 = vector.shape_cast %150 : vector<2x16xf32> to vector<2x1x16xf32>
    %156 = vector.broadcast %155 : vector<2x1x16xf32> to vector<2x16x16xf32>
    %157 = arith.addf %154, %156 : vector<2x16x16xf32>
    %cst_66 = arith.constant 2.000000e+01 : f32
    %158 = vector.broadcast %cst_66 : f32 to vector<2x16x16xf32>
    %159 = arith.minimumf %157, %158 : vector<2x16x16xf32>
    %160 = math.exp %159 : vector<2x16x16xf32>
    %cst_67 = arith.constant 2.000000e+00 : f32
    %161 = vector.broadcast %cst_67 : f32 to vector<2x16x16xf32>
    %162 = arith.addf %160, %161 : vector<2x16x16xf32>
    %163 = arith.mulf %160, %162 : vector<2x16x16xf32>
    %cst_68 = arith.constant 2.000000e+00 : f32
    %164 = vector.broadcast %cst_68 : f32 to vector<2x16x16xf32>
    %165 = arith.addf %163, %164 : vector<2x16x16xf32>
    %166 = tpu.reciprocal %165 {approx = true} : vector<2x16x16xf32> -> vector<2x16x16xf32>
    %167 = arith.mulf %163, %166 : vector<2x16x16xf32>
    %cst_69 = arith.constant 2.000000e+01 : f32
    %168 = vector.broadcast %cst_69 : f32 to vector<2x16x16xf32>
    %169 = arith.cmpf ogt, %157, %168 : vector<2x16x16xf32>
    %170 = arith.mulf %157, %167 : vector<2x16x16xf32>
    %171 = arith.select %169, %157, %170 : vector<2x16x16xi1>, vector<2x16x16xf32>
    %c0_70 = arith.constant 0 : index
    %c0_71 = arith.constant 0 : index
    %172 = vector.load %arg12[%c0_70, %c0_71] : memref<8x16xbf16, #tpu.memory_space<vmem>>, vector<8x16xbf16>
    %cst_72 = arith.constant dense<0.000000e+00> : vector<32x16xf32>
    %173 = tpu.matmul %25, %172, %cst_72 {dimension_numbers = #tpu.dot_dimension_numbers<[1], [0], [0], [1], [0, 0, 1, 1], [], []>} : vector<32x8xbf16>, vector<8x16xbf16>, vector<32x16xf32> -> vector<32x16xf32>
    %c0_73 = arith.constant 0 : index
    %c0_74 = arith.constant 0 : index
    %174 = vector.load %arg13[%c0_73, %c0_74] : memref<1x16xf32, #tpu.memory_space<vmem>>, vector<1x16xf32>
    %175 = vector.broadcast %174 : vector<1x16xf32> to vector<32x16xf32>
    %176 = arith.addf %173, %175 : vector<32x16xf32>
    %177 = vector.shape_cast %171 : vector<2x16x16xf32> to vector<32x16xf32>
    %178 = arith.addf %177, %176 : vector<32x16xf32>
    %c0_75 = arith.constant 0 : index
    %c0_76 = arith.constant 0 : index
    %179 = vector.load %arg16[%c0_75, %c0_76] : memref<32x16xf32, #tpu.memory_space<vmem>>, vector<32x16xf32>
    tpu.vector_store %arg16[%c0_75, %c0_76], %178 {strides = array<i32>} : memref<32x16xf32, #tpu.memory_space<vmem>>, vector<32x16xf32>,
    return
  }
  func.func @transform_0(%arg0: i32) -> (i32, i32) {
    %c0_i32 = arith.constant 0 : i32
    %c0_i32_0 = arith.constant 0 : i32
    return %arg0, %c0_i32 : i32, i32
  }
  func.func @transform_1(%arg0: i32) -> (i32, i32) {
    %c0_i32 = arith.constant 0 : i32
    %c0_i32_0 = arith.constant 0 : i32
    return %arg0, %c0_i32 : i32, i32
  }
  func.func @transform_2(%arg0: i32) -> (i32, i32) {
    %c0_i32 = arith.constant 0 : i32
    %c0_i32_0 = arith.constant 0 : i32
    return %arg0, %c0_i32 : i32, i32
  }
  func.func @transform_3(%arg0: i32) -> (i32, i32, i32) {
    %c0_i32 = arith.constant 0 : i32
    %c0_i32_0 = arith.constant 0 : i32
    %c0_i32_1 = arith.constant 0 : i32
    %c0_i32_2 = arith.constant 0 : i32
    return %c0_i32, %c0_i32_0, %c0_i32_1 : i32, i32, i32
  }
  func.func @transform_4(%arg0: i32) -> (i32, i32) {
    %c0_i32 = arith.constant 0 : i32
    %c0_i32_0 = arith.constant 0 : i32
    %c0_i32_1 = arith.constant 0 : i32
    return %c0_i32, %c0_i32_0 : i32, i32
  }
  func.func @transform_5(%arg0: i32) -> (i32, i32) {
    %c0_i32 = arith.constant 0 : i32
    %c0_i32_0 = arith.constant 0 : i32
    %c0_i32_1 = arith.constant 0 : i32
    return %c0_i32, %c0_i32_0 : i32, i32
  }
  func.func @transform_6(%arg0: i32) -> (i32, i32) {
    %c0_i32 = arith.constant 0 : i32
    %c0_i32_0 = arith.constant 0 : i32
    %c0_i32_1 = arith.constant 0 : i32
    return %c0_i32, %c0_i32_0 : i32, i32
  }
  func.func @transform_7(%arg0: i32) -> (i32, i32, i32) {
    %c0_i32 = arith.constant 0 : i32
    %c0_i32_0 = arith.constant 0 : i32
    %c0_i32_1 = arith.constant 0 : i32
    %c0_i32_2 = arith.constant 0 : i32
    return %c0_i32, %c0_i32_0, %c0_i32_1 : i32, i32, i32
  }
  func.func @transform_8(%arg0: i32) -> (i32, i32) {
    %c0_i32 = arith.constant 0 : i32
    %c0_i32_0 = arith.constant 0 : i32
    %c0_i32_1 = arith.constant 0 : i32
    return %c0_i32, %c0_i32_0 : i32, i32
  }
  func.func @transform_9(%arg0: i32) -> (i32, i32) {
    %c0_i32 = arith.constant 0 : i32
    %c0_i32_0 = arith.constant 0 : i32
    %c0_i32_1 = arith.constant 0 : i32
    return %c0_i32, %c0_i32_0 : i32, i32
  }
  func.func @transform_10(%arg0: i32) -> (i32, i32) {
    %c0_i32 = arith.constant 0 : i32
    %c0_i32_0 = arith.constant 0 : i32
    %c0_i32_1 = arith.constant 0 : i32
    return %c0_i32, %c0_i32_0 : i32, i32
  }
  func.func @transform_11(%arg0: i32) -> (i32, i32) {
    %c0_i32 = arith.constant 0 : i32
    %c0_i32_0 = arith.constant 0 : i32
    %c0_i32_1 = arith.constant 0 : i32
    return %c0_i32, %c0_i32_0 : i32, i32
  }
  func.func @transform_12(%arg0: i32) -> (i32, i32) {
    %c0_i32 = arith.constant 0 : i32
    %c0_i32_0 = arith.constant 0 : i32
    %c0_i32_1 = arith.constant 0 : i32
    return %c0_i32, %c0_i32_0 : i32, i32
  }
  func.func @transform_13(%arg0: i32) -> (i32, i32) {
    %c0_i32 = arith.constant 0 : i32
    %c0_i32_0 = arith.constant 0 : i32
    %c0_i32_1 = arith.constant 0 : i32
    return %c0_i32, %c0_i32_0 : i32, i32
  }
  func.func @transform_14(%arg0: i32) -> (i32, i32) {
    %c0_i32 = arith.constant 0 : i32
    %c0_i32_0 = arith.constant 0 : i32
    %c0_i32_1 = arith.constant 0 : i32
    return %c0_i32, %c0_i32_0 : i32, i32
  }
  func.func @transform_15(%arg0: i32) -> (i32, i32) {
    %c0_i32 = arith.constant 0 : i32
    %c0_i32_0 = arith.constant 0 : i32
    return %arg0, %c0_i32 : i32, i32
  }
}

</mosaic_0001>

<llo_original>
// kernel: tpu_custom_call.1
$region0: #{tpu_custom_call.1}
  #allocation0 [shape = 'u32[]', space=smem, size = 0x4, offset = 0x4, fixed_abs, tag = 'smem constant byte address 0x4 - core index']
  #allocation1 [shape = 'u32[144,128]{1,0:T(1,128)}', space=vmem, size = 0x12000, scoped, tag = 'internal scratch']
  %s0 = inlined_call_operand.hbm [shape: f32[8,128], index: 0, kind: input, shape index: {}]
  %s1 = inlined_call_operand.hbm [shape: f32[8,128], index: 1, kind: output, shape index: {}]
  %s2 = sld [smem:[#allocation0]]
  $region18: #{tpu_custom_call.1} parent=0
    _
  %s4 = ssub.s32 1, %s2
  %s5 = scalar_select 0, %s4, %s2
  $region1: #{tpu_custom_call.1} parent=0
    #allocation2 [shape = 'u8[4096]{0}', space=vmem, size = 0x1000, scoped, tag = 'input window, operand 0, single buffered']
    #allocation3 [shape = 's32[1]{0}', space=sflag, size = 0x4, scoped, tag = 'scoped memory for tpu_custom_call.1']
    #allocation4 [shape = 's32[1]{0}', space=sflag, size = 0x4, scoped, tag = 'scoped memory for tpu_custom_call.1']
    #allocation5 [shape = 'u8[4096]{0}', space=vmem, size = 0x1000, scoped, tag = 'output window, operand 0, single buffered']
    %6 = vsyncpa [#allocation3], 0
    %7 = vsyncpa [#allocation4], 0
    // Predicated region
    $region2: #{tpu_custom_call.1} parent=1 // pred_check
      _
    $region3: #{tpu_custom_call.1} parent=1 // pred_check_branch
      %9 = sbr.rel (0) target = $region5
    $region4: #{tpu_custom_call.1} parent=1 // pred_region
      %s11 = ssub.s32 128, 128
      %12 = vsyncadd [#allocation3], %s11
      %s14 = sshll.u32 [#allocation2], 4
      %s15 = int_to_ptr.vmem [resolvable:$true] %s14
      %17 = dma.hbm_to_vmem [thread:$0]  %s0, 128, %s15, [#allocation3]
    $region5: #{tpu_custom_call.1} parent=1 // pred_fallthru
      _
    // Predicated region
    $region6: #{tpu_custom_call.1} parent=1 // pred_check
      _
    $region7: #{tpu_custom_call.1} parent=1 // pred_check_branch
      %19 = sbr.rel (0) target = $region9
    $region8: #{tpu_custom_call.1} parent=1 // pred_region
      %20 = dma.done [#allocation3], 128
    $region9: #{tpu_custom_call.1} parent=1 // pred_fallthru
      _
    %v21 = vld [vmem:[#allocation2] sm:$0xff]
    %v22 = vrot.slane %v21, 7
    %23 = vst [vmem:[#allocation5] sm:$0xff] %v22
    // Predicated region
    $region10: #{tpu_custom_call.1} parent=1 // pred_check
      _
    $region11: #{tpu_custom_call.1} parent=1 // pred_check_branch
      %25 = sbr.rel (0) target = $region13
    $region12: #{tpu_custom_call.1} parent=1 // pred_region
      %s27 = ssub.s32 128, 128
      %28 = vsyncadd [#allocation4], %s27
      %s30 = sshll.u32 [#allocation5], 4
      %s31 = int_to_ptr.vmem [resolvable:$true] %s30
      %33 = dma.vmem_to_hbm [thread:$0]  %s31, 128, %s1, [#allocation4]
    $region13: #{tpu_custom_call.1} parent=1 // pred_fallthru
      _
    // Predicated region
    $region14: #{tpu_custom_call.1} parent=1 // pred_check
      _
    $region15: #{tpu_custom_call.1} parent=1 // pred_check_branch
      %35 = sbr.rel (0) target = $region17
    $region16: #{tpu_custom_call.1} parent=1 // pred_region
      %36 = dma.done [#allocation4], 128
    $region17: #{tpu_custom_call.1} parent=1 // pred_fallthru
      _
    %37 = vsyncpa [#allocation3], 1
    %38 = vsyncpa [#allocation4], 1

// kernel: tpu_custom_call.1
$region0: #{tpu_custom_call.1}
  #allocation0 [shape = 'u32[]', space=smem, size = 0x4, offset = 0x4, fixed_abs, tag = 'smem constant byte address 0x4 - core index']
  #allocation1 [shape = 'u32[144,128]{1,0:T(1,128)}', space=vmem, size = 0x12000, scoped, tag = 'internal scratch']
  %s0 = inlined_call_operand.vmem [shape: bf16[32,8], index: 0, kind: input, shape index: {}]
  %s1 = inlined_call_operand.hbm [shape: f32[2,16], index: 1, kind: input, shape index: {}]
  %s2 = inlined_call_operand.hbm [shape: f32[2,16], index: 2, kind: input, shape index: {}]
  %s3 = inlined_call_operand.vmem [shape: bf16[3,8,16], index: 3, kind: input, shape index: {}]
  %s4 = inlined_call_operand.hbm [shape: f32[1,16], index: 4, kind: input, shape index: {}]
  %s5 = inlined_call_operand.hbm [shape: f32[1,16], index: 5, kind: input, shape index: {}]
  %s6 = inlined_call_operand.hbm [shape: f32[1,16], index: 6, kind: input, shape index: {}]
  %s7 = inlined_call_operand.vmem [shape: bf16[3,16,16], index: 7, kind: input, shape index: {}]
  %s8 = inlined_call_operand.vmem [shape: f32[1,16], index: 8, kind: input, shape index: {}]
  %s9 = inlined_call_operand.vmem [shape: f32[1,16], index: 9, kind: input, shape index: {}]
  %s10 = inlined_call_operand.vmem [shape: f32[1,16], index: 10, kind: input, shape index: {}]
  %s11 = inlined_call_operand.vmem [shape: bf16[8,16], index: 11, kind: input, shape index: {}]
  %s12 = inlined_call_operand.vmem [shape: f32[1,16], index: 12, kind: input, shape index: {}]
  %s13 = inlined_call_operand.vmem [shape: f32[16,8], index: 13, kind: input, shape index: {}]
  %s14 = inlined_call_operand.vmem [shape: f32[8,16], index: 14, kind: input, shape index: {}]
  %s15 = inlined_call_operand.vmem [shape: f32[32,16], index: 15, kind: output, shape index: {}]
  %s16 = sld [smem:[#allocation0]]
  $region90: #{tpu_custom_call.1} parent=0
    _
  %s18 = ssub.s32 1, %s16
  %s19 = scalar_select 0, %s18, %s16
  $region1: #{tpu_custom_call.1} parent=0
    #allocation2 [shape = 'u8[1024]{0}', space=vmem, size = 0x400, scoped, tag = 'input window, operand 1, single buffered']
    #allocation3 [shape = 's32[1]{0}', space=sflag, size = 0x4, scoped, tag = 'scoped memory for tpu_custom_call.1']
    #allocation4 [shape = 'u8[1024]{0}', space=vmem, size = 0x400, scoped, tag = 'input window, operand 2, single buffered']
    #allocation5 [shape = 's32[1]{0}', space=sflag, size = 0x4, scoped, tag = 'scoped memory for tpu_custom_call.1']
    #allocation6 [shape = 'u8[512]{0}', space=vmem, size = 0x400, scoped, tag = 'input window, operand 4, single buffered']
    #allocation7 [shape = 'u8[512]{0}', space=vmem, size = 0x400, scoped, tag = 'input window, operand 5, single buffered']
    #allocation8 [shape = 's32[1]{0}', space=sflag, size = 0x4, scoped, tag = 'scoped memory for tpu_custom_call.1']
    #allocation9 [shape = 'u8[512]{0}', space=vmem, size = 0x400, scoped, tag = 'input window, operand 6, single buffered']
    %20 = vsyncpa [#allocation3], 0
    %21 = vsyncpa [#allocation5], 0
    %22 = vsyncpa [#allocation8], 0
    // Predicated region
    $region2: #{tpu_custom_call.1} parent=1 // pred_check
      _
    $region3: #{tpu_custom_call.1} parent=1 // pred_check_branch
      %24 = sbr.rel (0) target = $region5
    $region4: #{tpu_custom_call.1} parent=1 // pred_region
      _
    $region5: #{tpu_custom_call.1} parent=1 // pred_fallthru
      _
    // Predicated region
    $region6: #{tpu_custom_call.1} parent=1 // pred_check
      _
    $region7: #{tpu_custom_call.1} parent=1 // pred_check_branch
      %26 = sbr.rel (0) target = $region9
    $region8: #{tpu_custom_call.1} parent=1 // pred_region
      %s28 = ssub.s32 32, 32
      %29 = vsyncadd [#allocation3], %s28
      %s31 = sshll.u32 [#allocation2], 4
      %s32 = int_to_ptr.vmem [resolvable:$true] %s31
      %34 = dma.hbm_to_vmem [thread:$0]  %s1, 32, %s32, [#allocation3]
    $region9: #{tpu_custom_call.1} parent=1 // pred_fallthru
      _
    // Predicated region
    $region10: #{tpu_custom_call.1} parent=1 // pred_check
      _
    $region11: #{tpu_custom_call.1} parent=1 // pred_check_branch
      %36 = sbr.rel (0) target = $region13
    $region12: #{tpu_custom_call.1} parent=1 // pred_region
      %s38 = ssub.s32 32, 32
      %39 = vsyncadd [#allocation5], %s38
      %s41 = sshll.u32 [#allocation4], 4
      %s42 = int_to_ptr.vmem [resolvable:$true] %s41
      %44 = dma.hbm_to_vmem [thread:$0]  %s2, 32, %s42, [#allocation5]
    $region13: #{tpu_custom_call.1} parent=1 // pred_fallthru
      _
    // Predicated region
    $region14: #{tpu_custom_call.1} parent=1 // pred_check
      _
    $region15: #{tpu_custom_call.1} parent=1 // pred_check_branch
      %46 = sbr.rel (0) target = $region17
    $region16: #{tpu_custom_call.1} parent=1 // pred_region
      _
    $region17: #{tpu_custom_call.1} parent=1 // pred_fallthru
      _
    // Predicated region
    $region18: #{tpu_custom_call.1} parent=1 // pred_check
      _
    $region19: #{tpu_custom_call.1} parent=1 // pred_check_branch
      %48 = sbr.rel (0) target = $region21
    $region20: #{tpu_custom_call.1} parent=1 // pred_region
      %s50 = ssub.s32 16, 16
      %51 = vsyncadd [#allocation5], %s50
      %s53 = sshll.u32 [#allocation6], 4
      %s54 = int_to_ptr.vmem [resolvable:$true] %s53
      %56 = dma.hbm_to_vmem [thread:$0]  %s4, 16, %s54, [#allocation5]
    $region21: #{tpu_custom_call.1} parent=1 // pred_fallthru
      _
    // Predicated region
    $region22: #{tpu_custom_call.1} parent=1 // pred_check
      _
    $region23: #{tpu_custom_call.1} parent=1 // pred_check_branch
      %58 = sbr.rel (0) target = $region25
    $region24: #{tpu_custom_call.1} parent=1 // pred_region
      %s60 = ssub.s32 16, 16
      %61 = vsyncadd [#allocation8], %s60
      %s63 = sshll.u32 [#allocation7], 4
      %s64 = int_to_ptr.vmem [resolvable:$true] %s63
      %66 = dma.hbm_to_vmem [thread:$0]  %s5, 16, %s64, [#allocation8]
    $region25: #{tpu_custom_call.1} parent=1 // pred_fallthru
      _
    // Predicated region
    $region26: #{tpu_custom_call.1} parent=1 // pred_check
      _
    $region27: #{tpu_custom_call.1} parent=1 // pred_check_branch
      %68 = sbr.rel (0) target = $region29
    $region28: #{tpu_custom_call.1} parent=1 // pred_region
      %s70 = ssub.s32 16, 16
      %71 = vsyncadd [#allocation8], %s70
      %s73 = sshll.u32 [#allocation9], 4
      %s74 = int_to_ptr.vmem [resolvable:$true] %s73
      %76 = dma.hbm_to_vmem [thread:$0]  %s6, 16, %s74, [#allocation8]
    $region29: #{tpu_custom_call.1} parent=1 // pred_fallthru
      _
    // Predicated region
    $region30: #{tpu_custom_call.1} parent=1 // pred_check
      _
    $region31: #{tpu_custom_call.1} parent=1 // pred_check_branch
      %78 = sbr.rel (0) target = $region33
    $region32: #{tpu_custom_call.1} parent=1 // pred_region
      _
    $region33: #{tpu_custom_call.1} parent=1 // pred_fallthru
      _
    // Predicated region
    $region34: #{tpu_custom_call.1} parent=1 // pred_check
      _
    $region35: #{tpu_custom_call.1} parent=1 // pred_check_branch
      %80 = sbr.rel (0) target = $region37
    $region36: #{tpu_custom_call.1} parent=1 // pred_region
      _
    $region37: #{tpu_custom_call.1} parent=1 // pred_fallthru
      _
    // Predicated region
    $region38: #{tpu_custom_call.1} parent=1 // pred_check
      _
    $region39: #{tpu_custom_call.1} parent=1 // pred_check_branch
      %82 = sbr.rel (0) target = $region41
    $region40: #{tpu_custom_call.1} parent=1 // pred_region
      _
    $region41: #{tpu_custom_call.1} parent=1 // pred_fallthru
      _
    // Predicated region
    $region42: #{tpu_custom_call.1} parent=1 // pred_check
      _
    $region43: #{tpu_custom_call.1} parent=1 // pred_check_branch
      %84 = sbr.rel (0) target = $region45
    $region44: #{tpu_custom_call.1} parent=1 // pred_region
      _
    $region45: #{tpu_custom_call.1} parent=1 // pred_fallthru
      _
    // Predicated region
    $region46: #{tpu_custom_call.1} parent=1 // pred_check
      _
    $region47: #{tpu_custom_call.1} parent=1 // pred_check_branch
      %86 = sbr.rel (0) target = $region49
    $region48: #{tpu_custom_call.1} parent=1 // pred_region
      _
    $region49: #{tpu_custom_call.1} parent=1 // pred_fallthru
      _
    // Predicated region
    $region50: #{tpu_custom_call.1} parent=1 // pred_check
      _
    $region51: #{tpu_custom_call.1} parent=1 // pred_check_branch
      %88 = sbr.rel (0) target = $region53
    $region52: #{tpu_custom_call.1} parent=1 // pred_region
      _
    $region53: #{tpu_custom_call.1} parent=1 // pred_fallthru
      _
    // Predicated region
    $region54: #{tpu_custom_call.1} parent=1 // pred_check
      _
    $region55: #{tpu_custom_call.1} parent=1 // pred_check_branch
      %90 = sbr.rel (0) target = $region57
    $region56: #{tpu_custom_call.1} parent=1 // pred_region
      _
    $region57: #{tpu_custom_call.1} parent=1 // pred_fallthru
      _
    // Predicated region
    $region58: #{tpu_custom_call.1} parent=1 // pred_check
      _
    $region59: #{tpu_custom_call.1} parent=1 // pred_check_branch
      %92 = sbr.rel (0) target = $region61
    $region60: #{tpu_custom_call.1} parent=1 // pred_region
      _
    $region61: #{tpu_custom_call.1} parent=1 // pred_fallthru
      _
    // Predicated region
    $region62: #{tpu_custom_call.1} parent=1 // pred_check
      _
    $region63: #{tpu_custom_call.1} parent=1 // pred_check_branch
      %94 = sbr.rel (0) target = $region65
    $region64: #{tpu_custom_call.1} parent=1 // pred_region
      %95 = dma.done [#allocation3], 32
    $region65: #{tpu_custom_call.1} parent=1 // pred_fallthru
      _
    // Predicated region
    $region66: #{tpu_custom_call.1} parent=1 // pred_check
      _
    $region67: #{tpu_custom_call.1} parent=1 // pred_check_branch
      %97 = sbr.rel (0) target = $region69
    $region68: #{tpu_custom_call.1} parent=1 // pred_region
      %98 = dma.done [#allocation5], 32
    $region69: #{tpu_custom_call.1} parent=1 // pred_fallthru
      _
    // Predicated region
    $region70: #{tpu_custom_call.1} parent=1 // pred_check
      _
    $region71: #{tpu_custom_call.1} parent=1 // pred_check_branch
      %100 = sbr.rel (0) target = $region73
    $region72: #{tpu_custom_call.1} parent=1 // pred_region
      %101 = dma.done [#allocation5], 16
    $region73: #{tpu_custom_call.1} parent=1 // pred_fallthru
      _
    // Predicated region
    $region74: #{tpu_custom_call.1} parent=1 // pred_check
      _
    $region75: #{tpu_custom_call.1} parent=1 // pred_check_branch
      %103 = sbr.rel (0) target = $region77
    $region76: #{tpu_custom_call.1} parent=1 // pred_region
      %104 = dma.done [#allocation8], 16
    $region77: #{tpu_custom_call.1} parent=1 // pred_fallthru
      _
    // Predicated region
    $region78: #{tpu_custom_call.1} parent=1 // pred_check
      _
    $region79: #{tpu_custom_call.1} parent=1 // pred_check_branch
      %106 = sbr.rel (0) target = $region81
    $region80: #{tpu_custom_call.1} parent=1 // pred_region
      %107 = dma.done [#allocation8], 16
    $region81: #{tpu_custom_call.1} parent=1 // pred_fallthru
      _
    %v109 = vlaneseq
    %v110 = vshrl.u32 %v109, 7
    %v111 = vadd.s32 %v110, 8
    %v112 = vadd.s32 %v110, 16
    %v113 = vadd.s32 %v110, 24
    %vm114 = vcmp.lt.s32.totalorder %v110, 0
    %v115 = vsub.s32 0, %v110
    %v116 = vsel %vm114, %v115, %v110
    %v117 = vshrl.u32 %v116, 4
    %v118 = vand.u32 %v116, 15
    %v119 = vsub.s32 0, %v118
    %v120 = vsel %vm114, %v119, %v118
    %vm121 = vcmp.lt.s32.totalorder %v111, 0
    %v122 = vsub.s32 0, %v111
    %v123 = vsel %vm121, %v122, %v111
    %v124 = vshrl.u32 %v123, 4
    %v125 = vand.u32 %v123, 15
    %v126 = vsub.s32 0, %v125
    %v127 = vsel %vm121, %v126, %v125
    %vm128 = vcmp.lt.s32.totalorder %v112, 0
    %v129 = vsub.s32 0, %v112
    %v130 = vsel %vm128, %v129, %v112
    %v131 = vshrl.u32 %v130, 4
    %v132 = vand.u32 %v130, 15
    %v133 = vsub.s32 0, %v132
    %v134 = vsel %vm128, %v133, %v132
    %vm135 = vcmp.lt.s32.totalorder %v113, 0
    %v136 = vsub.s32 0, %v113
    %v137 = vsel %vm135, %v136, %v113
    %v138 = vshrl.u32 %v137, 4
    %v139 = vand.u32 %v137, 15
    %v140 = vsub.s32 0, %v139
    %v141 = vsel %vm135, %v140, %v139
    %vm142 = vcmp.ne.s32.totalorder %v120, 0
    %vm143 = vcmp.ne.s32.totalorder %v127, 0
    %vm144 = vcmp.ne.s32.totalorder %v134, 0
    %vm145 = vcmp.ne.s32.totalorder %v141, 0
    %vm146 = vcmp.lt.s32.totalorder %v120, 0
    %vm147 = vcmp.lt.s32.totalorder %v127, 0
    %vm148 = vcmp.lt.s32.totalorder %v134, 0
    %vm149 = vcmp.lt.s32.totalorder %v141, 0
    %vm150 = vmand %vm146, %vm142
    %vm151 = vmand %vm147, %vm143
    %vm152 = vmand %vm148, %vm144
    %vm153 = vmand %vm149, %vm145
    %v154 = vadd.s32 %v120, 16
    %v155 = vadd.s32 %v127, 16
    %v156 = vadd.s32 %v134, 16
    %v157 = vadd.s32 %v141, 16
    %v158 = vsel %vm150, %v154, %v120
    %v159 = vsel %vm151, %v155, %v127
    %v160 = vsel %vm152, %v156, %v134
    %v161 = vsel %vm153, %v157, %v141
    %vm162 = vcmp.ne.s32.totalorder %v158, 0
    %vm163 = vcmp.ne.s32.totalorder %v159, 0
    %vm164 = vcmp.ne.s32.totalorder %v160, 0
    %vm165 = vcmp.ne.s32.totalorder %v161, 0
    %v166 = vsel %vm162, 1, 0
    %v167 = vsel %vm163, 1, 0
    %v168 = vsel %vm164, 1, 0
    %v169 = vsel %vm165, 1, 0
    %v170 = vcvt.s32.f32 %v166
    %v171 = vcvt.s32.f32 %v167
    %v172 = vcvt.s32.f32 %v168
    %v173 = vcvt.s32.f32 %v169
    %vm174 = vcmp.ne.s32.totalorder %v158, 15
    %vm175 = vcmp.ne.s32.totalorder %v159, 15
    %vm176 = vcmp.ne.s32.totalorder %v160, 15
    %vm177 = vcmp.ne.s32.totalorder %v161, 15
    %v178 = vsel %vm174, 1, 0
    %v179 = vsel %vm175, 1, 0
    %v180 = vsel %vm176, 1, 0
    %v181 = vsel %vm177, 1, 0
    %v182 = vcvt.s32.f32 %v178
    %v183 = vcvt.s32.f32 %v179
    %v184 = vcvt.s32.f32 %v180
    %v185 = vcvt.s32.f32 %v181
    %v186 = vld [vmem:[%s0] sm:$0xf]
    %v187 = vld [vmem:[%s0 + $0x4] sm:$0xf]
    %v188 = vld [vmem:[%s0 + $0x8] sm:$0xf]
    %v189 = vld [vmem:[%s0 + $0xc] sm:$0xf]
    %v190 = vld [vmem:[%s13] sm:$0xff]
    %v191 = vld [vmem:[%s13 + $0x8] sm:$0xff]
    %v192 = vld [vmem:[%s14] sm:$0xff]
    %v193 = vld [vmem:[#allocation6] sm:$0x1]
    %v194 = vld [vmem:[%s3] sm:$0xf]
    %v199 = vunpack.c.l.b16 %v186
    %v200 = vunpack.c.l.b16 %v187
    %v201 = vunpack.c.l.b16 %v188
    %v202 = vunpack.c.l.b16 %v189
    %v203 = vpack.c.b16 %v200, %v199
    %v204 = vpack.c.b16 %v202, %v201
    %vm205 = vcmask 64512
    %v207 = vsel %vm205, %v203, 0
    %v210 = vsel %vm205, %v204, 0
    %vm212 = vcmask 1043456
    %v214 = vsel %vm212, %v194, 0
    %216 = vmatprep.subr.bf16.mxu0 0
    %217 = vmatpush1.bf16.msra.mxu0 0
    %218 = vmatprep.subr.bf16.mxu0 0
    %219 = vmatpush1.bf16.msra.mxu0 0
    %220 = vmatprep.subr.bf16.mxu0 0
    %221 = vmatpush1.bf16.msra.mxu0 0
    %222 = vmatprep.subr.bf16.mxu0 0
    %223 = vmatpush1.bf16.msra.mxu0 0
    %224 = vmatprep.subr.bf16.mxu0 0
    %225 = vmatpush1.bf16.msra.mxu0 0
    %226 = vmatprep.subr.bf16.mxu0 0
    %227 = vmatpush1.bf16.msra.mxu0 0
    %228 = vmatprep.subr.bf16.mxu0 0
    %229 = vmatpush1.bf16.msra.mxu0 0
    %230 = vmatprep.subr.bf16.mxu0 0
    %231 = vmatpush1.bf16.msra.mxu0 %v214
    %232 = vmatprep.subr.bf16.mxu0 0
    %233 = vmatpush2.bf16.msra.mxu0 0
    %234 = vmatprep.subr.bf16.mxu0 0
    %235 = vmatpush2.bf16.msra.mxu0 0
    %236 = vmatprep.subr.bf16.mxu0 0
    %237 = vmatpush2.bf16.msra.mxu0 0
    %238 = vmatprep.subr.bf16.mxu0 0
    %239 = vmatpush2.bf16.msra.mxu0 0
    %240 = vmatprep.subr.bf16.mxu0 0
    %241 = vmatpush2.bf16.msra.mxu0 0
    %242 = vmatprep.subr.bf16.mxu0 0
    %243 = vmatpush2.bf16.msra.mxu0 0
    %244 = vmatprep.subr.bf16.mxu0 0
    %245 = vmatpush2.bf16.msra.mxu0 0
    %246 = vmatprep.subr.bf16.mxu0 0
    %247 = vmatpush2.bf16.msra.mxu0 0
    %248 = vmatprep.mubr.bf16.mxu0 0
    %249 = vmatmul.mubr.bf16.gmra.mxu0 %v207
    %v250 = vpop.f32.mrf.mxu0
    %v251 = vadd.f32 0.0, %v250
    %v252 = vpop.f32.mrf.mxu0
    %v253 = vpop.f32.mrf.mxu0
    %v254 = vadd.f32 0.0, %v253
    %v255 = vpop.f32.mrf.mxu0
    %256 = vmatprep.mubr.bf16.mxu0 0
    %257 = vmatmul.mubr.bf16.gmra.mxu0 %v210
    %v258 = vpop.f32.mrf.mxu0
    %v259 = vadd.f32 0.0, %v258
    %v260 = vpop.f32.mrf.mxu0
    %v261 = vpop.f32.mrf.mxu0
    %v262 = vadd.f32 0.0, %v261
    %v263 = vpop.f32.mrf.mxu0
    %264 = vdwg.mxu0
    %s265 = scalar_lea.vmem %s3, 4
    %v266 = vld [vmem:[%s265] sm:$0xf]
    %v268 = vsel %vm212, %v266, 0
    %270 = vmatprep.subr.bf16.mxu0 0
    %271 = vmatpush1.bf16.msra.mxu0 0
    %272 = vmatprep.subr.bf16.mxu0 0
    %273 = vmatpush1.bf16.msra.mxu0 0
    %274 = vmatprep.subr.bf16.mxu0 0
    %275 = vmatpush1.bf16.msra.mxu0 0
    %276 = vmatprep.subr.bf16.mxu0 0
    %277 = vmatpush1.bf16.msra.mxu0 0
    %278 = vmatprep.subr.bf16.mxu0 0
    %279 = vmatpush1.bf16.msra.mxu0 0
    %280 = vmatprep.subr.bf16.mxu0 0
    %281 = vmatpush1.bf16.msra.mxu0 0
    %282 = vmatprep.subr.bf16.mxu0 0
    %283 = vmatpush1.bf16.msra.mxu0 0
    %284 = vmatprep.subr.bf16.mxu0 0
    %285 = vmatpush1.bf16.msra.mxu0 %v268
    %286 = vmatprep.subr.bf16.mxu0 0
    %287 = vmatpush2.bf16.msra.mxu0 0
    %288 = vmatprep.subr.bf16.mxu0 0
    %289 = vmatpush2.bf16.msra.mxu0 0
    %290 = vmatprep.subr.bf16.mxu0 0
    %291 = vmatpush2.bf16.msra.mxu0 0
    %292 = vmatprep.subr.bf16.mxu0 0
    %293 = vmatpush2.bf16.msra.mxu0 0
    %294 = vmatprep.subr.bf16.mxu0 0
    %295 = vmatpush2.bf16.msra.mxu0 0
    %296 = vmatprep.subr.bf16.mxu0 0
    %297 = vmatpush2.bf16.msra.mxu0 0
    %298 = vmatprep.subr.bf16.mxu0 0
    %299 = vmatpush2.bf16.msra.mxu0 0
    %300 = vmatprep.subr.bf16.mxu0 0
    %301 = vmatpush2.bf16.msra.mxu0 0
    %302 = vmatprep.mubr.bf16.mxu0 0
    %303 = vmatmul.mubr.bf16.gmra.mxu0 %v207
    %v304 = vpop.f32.mrf.mxu0
    %v305 = vadd.f32 0.0, %v304
    %v306 = vpop.f32.mrf.mxu0
    %v307 = vpop.f32.mrf.mxu0
    %v308 = vadd.f32 0.0, %v307
    %v309 = vpop.f32.mrf.mxu0
    %310 = vmatprep.mubr.bf16.mxu0 0
    %311 = vmatmul.mubr.bf16.gmra.mxu0 %v210
    %v312 = vpop.f32.mrf.mxu0
    %v313 = vadd.f32 0.0, %v312
    %v314 = vpop.f32.mrf.mxu0
    %v315 = vpop.f32.mrf.mxu0
    %v316 = vadd.f32 0.0, %v315
    %v317 = vpop.f32.mrf.mxu0
    %318 = vdwg.mxu0
    %s319 = scalar_lea.vmem %s3, 8
    %v320 = vld [vmem:[%s319] sm:$0xf]
    %v322 = vsel %vm212, %v320, 0
    %324 = vmatprep.subr.bf16.mxu0 0
    %325 = vmatpush1.bf16.msra.mxu0 0
    %326 = vmatprep.subr.bf16.mxu0 0
    %327 = vmatpush1.bf16.msra.mxu0 0
    %328 = vmatprep.subr.bf16.mxu0 0
    %329 = vmatpush1.bf16.msra.mxu0 0
    %330 = vmatprep.subr.bf16.mxu0 0
    %331 = vmatpush1.bf16.msra.mxu0 0
    %332 = vmatprep.subr.bf16.mxu0 0
    %333 = vmatpush1.bf16.msra.mxu0 0
    %334 = vmatprep.subr.bf16.mxu0 0
    %335 = vmatpush1.bf16.msra.mxu0 0
    %336 = vmatprep.subr.bf16.mxu0 0
    %337 = vmatpush1.bf16.msra.mxu0 0
    %338 = vmatprep.subr.bf16.mxu0 0
    %339 = vmatpush1.bf16.msra.mxu0 %v322
    %340 = vmatprep.subr.bf16.mxu0 0
    %341 = vmatpush2.bf16.msra.mxu0 0
    %342 = vmatprep.subr.bf16.mxu0 0
    %343 = vmatpush2.bf16.msra.mxu0 0
    %344 = vmatprep.subr.bf16.mxu0 0
    %345 = vmatpush2.bf16.msra.mxu0 0
    %346 = vmatprep.subr.bf16.mxu0 0
    %347 = vmatpush2.bf16.msra.mxu0 0
    %348 = vmatprep.subr.bf16.mxu0 0
    %349 = vmatpush2.bf16.msra.mxu0 0
    %350 = vmatprep.subr.bf16.mxu0 0
    %351 = vmatpush2.bf16.msra.mxu0 0
    %352 = vmatprep.subr.bf16.mxu0 0
    %353 = vmatpush2.bf16.msra.mxu0 0
    %354 = vmatprep.subr.bf16.mxu0 0
    %355 = vmatpush2.bf16.msra.mxu0 0
    %356 = vmatprep.mubr.bf16.mxu0 0
    %357 = vmatmul.mubr.bf16.gmra.mxu0 %v207
    %v358 = vpop.f32.mrf.mxu0
    %v359 = vadd.f32 0.0, %v358
    %v360 = vpop.f32.mrf.mxu0
    %v361 = vpop.f32.mrf.mxu0
    %v362 = vadd.f32 0.0, %v361
    %v363 = vpop.f32.mrf.mxu0
    %364 = vmatprep.mubr.bf16.mxu0 0
    %365 = vmatmul.mubr.bf16.gmra.mxu0 %v210
    %v366 = vpop.f32.mrf.mxu0
    %v367 = vadd.f32 0.0, %v366
    %v368 = vpop.f32.mrf.mxu0
    %v369 = vpop.f32.mrf.mxu0
    %v370 = vadd.f32 0.0, %v369
    %v371 = vpop.f32.mrf.mxu0
    %372 = vdwg.mxu0
    %v374 = vrot.slane %v262, 7
    %vm379 = vcmask 1040384
    %v380 = vrot.slane %v251, 7
    %v381 = vrot.slane %v254, 7
    %v382 = vsel %vm379, %v380, %v381
    %v383 = vrot.slane %v259, 7
    %v384 = vsel %vm379, %v381, %v383
    %v385 = vsel %vm379, %v383, %v374
    %v390 = vsel %vm379, %v374, %v380
    %v391 = vmul.f32 %v390, %v170
    %v392 = vmul.f32 %v382, %v171
    %v393 = vmul.f32 %v384, %v172
    %v394 = vmul.f32 %v385, %v173
    %v395 = vadd.f32 %v391, %v305
    %v396 = vadd.f32 %v392, %v308
    %v397 = vadd.f32 %v393, %v313
    %v398 = vadd.f32 %v394, %v316
    %vm403 = vcmask 1046528
    %v404 = vrot.slane %v359, 1
    %v405 = vrot.slane %v362, 1
    %v406 = vsel %vm403, %v404, %v405
    %v407 = vrot.slane %v367, 1
    %v408 = vsel %vm403, %v405, %v407
    %v409 = vrot.slane %v370, 1
    %v410 = vsel %vm403, %v407, %v409
    %v416 = vsel %vm403, %v409, %v404
    %v417 = vmul.f32 %v406, %v182
    %v418 = vmul.f32 %v408, %v183
    %v419 = vmul.f32 %v410, %v184
    %v420 = vmul.f32 %v416, %v185
    %v421 = vadd.f32 %v395, %v417
    %v422 = vadd.f32 %v396, %v418
    %v423 = vadd.f32 %v397, %v419
    %v424 = vadd.f32 %v398, %v420
    %v426 = vlaneseq
    %v427 = vshrl.u32 %v426, 7
    %v428 = vsub.s32 0, %v427
    %v429 = vrot.slane %v193, %v428
    %v431 = vadd.f32 %v421, %v429
    %v432 = vadd.f32 %v422, %v429
    %v433 = vadd.f32 %v423, %v429
    %v434 = vadd.f32 %v424, %v429
    %vm435 = vcmask 130048
    %v436 = vsel %vm435, %v431, 0.0
    %v437 = vsel %vm435, %v432, 0.0
    %v438 = vadd.f32 %v436, %v437
    %v439 = vrot.slane %v438, 4
    %v440 = vadd.f32 %v438, %v439
    %v441 = vrot.slane %v440, 2
    %v442 = vadd.f32 %v440, %v441
    %v443 = vrot.slane %v442, 1
    %v444 = vadd.f32 %v442, %v443
    %v445 = vsel %vm435, %v433, 0.0
    %v446 = vsel %vm435, %v434, 0.0
    %v447 = vadd.f32 %v445, %v446
    %v448 = vrot.slane %v447, 4
    %v449 = vadd.f32 %v447, %v448
    %v450 = vrot.slane %v449, 2
    %v451 = vadd.f32 %v449, %v450
    %v452 = vrot.slane %v451, 1
    %v453 = vadd.f32 %v451, %v452
    %v454 = vmul.f32 %v431, %v431
    %v455 = vmul.f32 %v432, %v432
    %v456 = vmul.f32 %v433, %v433
    %v457 = vmul.f32 %v434, %v434
    %v458 = vsel %vm435, %v454, 0.0
    %v459 = vsel %vm435, %v455, 0.0
    %v460 = vadd.f32 %v458, %v459
    %v461 = vrot.slane %v460, 4
    %v462 = vadd.f32 %v460, %v461
    %v463 = vrot.slane %v462, 2
    %v464 = vadd.f32 %v462, %v463
    %v465 = vrot.slane %v464, 1
    %v466 = vadd.f32 %v464, %v465
    %v467 = vsel %vm435, %v456, 0.0
    %v468 = vsel %vm435, %v457, 0.0
    %v469 = vadd.f32 %v467, %v468
    %v470 = vrot.slane %v469, 4
    %v471 = vadd.f32 %v469, %v470
    %v472 = vrot.slane %v471, 2
    %v473 = vadd.f32 %v471, %v472
    %v474 = vrot.slane %v473, 1
    %v475 = vadd.f32 %v473, %v474
    %vm478 = vcmask 1041409
    %v479 = vsel %vm478, %v453, %v444
    %v480 = vsel %vm435, %v479, 0
    %482 = vmatprep.subr.mxu0 0.0
    %483 = vmatpush1.msra.mxu0 0.0
    %484 = vmatprep.subr.mxu0 0.0
    %485 = vmatpush1.msra.mxu0 0.0
    %486 = vmatprep.subr.mxu0 0.0
    %487 = vmatpush1.msra.mxu0 0.0
    %488 = vmatprep.subr.mxu0 0.0
    %489 = vmatpush1.msra.mxu0 0.0
    %490 = vmatprep.subr.mxu0 0.0
    %491 = vmatpush1.msra.mxu0 0.0
    %492 = vmatprep.subr.mxu0 0.0
    %493 = vmatpush1.msra.mxu0 0.0
    %494 = vmatprep.subr.mxu0 0.0
    %495 = vmatpush1.msra.mxu0 0.0
    %496 = vmatprep.subr.mxu0 0.0
    %497 = vmatpush1.msra.mxu0 0.0
    %498 = vmatprep.subr.mxu0 0.0
    %499 = vmatpush1.msra.mxu0 0.0
    %500 = vmatprep.subr.mxu0 0.0
    %501 = vmatpush1.msra.mxu0 0.0
    %502 = vmatprep.subr.mxu0 0.0
    %503 = vmatpush1.msra.mxu0 0.0
    %504 = vmatprep.subr.mxu0 0.0
    %505 = vmatpush1.msra.mxu0 0.0
    %506 = vmatprep.subr.mxu0 0.0
    %507 = vmatpush1.msra.mxu0 0.0
    %508 = vmatprep.subr.mxu0 0.0
    %509 = vmatpush1.msra.mxu0 0.0
    %510 = vmatprep.subr.mxu0 0.0
    %511 = vmatpush1.msra.mxu0 %v191
    %512 = vmatprep.subr.mxu0 0.0
    %513 = vmatpush1.msra.mxu0 %v190
    %514 = vmatprep.subr.mxu0 0.0
    %515 = vmatpush2.msra.mxu0 0.0
    %516 = vmatprep.subr.mxu0 0.0
    %517 = vmatpush2.msra.mxu0 0.0
    %518 = vmatprep.subr.mxu0 0.0
    %519 = vmatpush2.msra.mxu0 0.0
    %520 = vmatprep.subr.mxu0 0.0
    %521 = vmatpush2.msra.mxu0 0.0
    %522 = vmatprep.subr.mxu0 0.0
    %523 = vmatpush2.msra.mxu0 0.0
    %524 = vmatprep.subr.mxu0 0.0
    %525 = vmatpush2.msra.mxu0 0.0
    %526 = vmatprep.subr.mxu0 0.0
    %527 = vmatpush2.msra.mxu0 0.0
    %528 = vmatprep.subr.mxu0 0.0
    %529 = vmatpush2.msra.mxu0 0.0
    %530 = vmatprep.subr.mxu0 0.0
    %531 = vmatpush2.msra.mxu0 0.0
    %532 = vmatprep.subr.mxu0 0.0
    %533 = vmatpush2.msra.mxu0 0.0
    %534 = vmatprep.subr.mxu0 0.0
    %535 = vmatpush2.msra.mxu0 0.0
    %536 = vmatprep.subr.mxu0 0.0
    %537 = vmatpush2.msra.mxu0 0.0
    %538 = vmatprep.subr.mxu0 0.0
    %539 = vmatpush2.msra.mxu0 0.0
    %540 = vmatprep.subr.mxu0 0.0
    %541 = vmatpush2.msra.mxu0 0.0
    %542 = vmatprep.subr.mxu0 0.0
    %543 = vmatpush2.msra.mxu0 0.0
    %544 = vmatprep.subr.mxu0 0.0
    %545 = vmatpush2.msra.mxu0 0.0
    %546 = vmatprep.mubr.f32.mxu0 0.0
    %547 = vmatmul.mubr.f32.gmra.mxu0 %v480
    %v548 = vpop.f32.mrf.mxu0
    %v549 = vadd.f32 0.0, %v548
    %v550 = vpop.f32.mrf.mxu0
    %551 = vdwg.mxu0
    %v553 = vsel %vm205, %v549, 0
    %555 = vmatprep.subr.mxu0 0.0
    %556 = vmatpush1.msra.mxu0 0.0
    %557 = vmatprep.subr.mxu0 0.0
    %558 = vmatpush1.msra.mxu0 0.0
    %559 = vmatprep.subr.mxu0 0.0
    %560 = vmatpush1.msra.mxu0 0.0
    %561 = vmatprep.subr.mxu0 0.0
    %562 = vmatpush1.msra.mxu0 0.0
    %563 = vmatprep.subr.mxu0 0.0
    %564 = vmatpush1.msra.mxu0 0.0
    %565 = vmatprep.subr.mxu0 0.0
    %566 = vmatpush1.msra.mxu0 0.0
    %567 = vmatprep.subr.mxu0 0.0
    %568 = vmatpush1.msra.mxu0 0.0
    %569 = vmatprep.subr.mxu0 0.0
    %570 = vmatpush1.msra.mxu0 0.0
    %571 = vmatprep.subr.mxu0 0.0
    %572 = vmatpush1.msra.mxu0 0.0
    %573 = vmatprep.subr.mxu0 0.0
    %574 = vmatpush1.msra.mxu0 0.0
    %575 = vmatprep.subr.mxu0 0.0
    %576 = vmatpush1.msra.mxu0 0.0
    %577 = vmatprep.subr.mxu0 0.0
    %578 = vmatpush1.msra.mxu0 0.0
    %579 = vmatprep.subr.mxu0 0.0
    %580 = vmatpush1.msra.mxu0 0.0
    %581 = vmatprep.subr.mxu0 0.0
    %582 = vmatpush1.msra.mxu0 0.0
    %583 = vmatprep.subr.mxu0 0.0
    %584 = vmatpush1.msra.mxu0 0.0
    %585 = vmatprep.subr.mxu0 0.0
    %586 = vmatpush1.msra.mxu0 %v192
    %587 = vmatprep.subr.mxu0 0.0
    %588 = vmatpush2.msra.mxu0 0.0
    %589 = vmatprep.subr.mxu0 0.0
    %590 = vmatpush2.msra.mxu0 0.0
    %591 = vmatprep.subr.mxu0 0.0
    %592 = vmatpush2.msra.mxu0 0.0
    %593 = vmatprep.subr.mxu0 0.0
    %594 = vmatpush2.msra.mxu0 0.0
    %595 = vmatprep.subr.mxu0 0.0
    %596 = vmatpush2.msra.mxu0 0.0
    %597 = vmatprep.subr.mxu0 0.0
    %598 = vmatpush2.msra.mxu0 0.0
    %599 = vmatprep.subr.mxu0 0.0
    %600 = vmatpush2.msra.mxu0 0.0
    %601 = vmatprep.subr.mxu0 0.0
    %602 = vmatpush2.msra.mxu0 0.0
    %603 = vmatprep.subr.mxu0 0.0
    %604 = vmatpush2.msra.mxu0 0.0
    %605 = vmatprep.subr.mxu0 0.0
    %606 = vmatpush2.msra.mxu0 0.0
    %607 = vmatprep.subr.mxu0 0.0
    %608 = vmatpush2.msra.mxu0 0.0
    %609 = vmatprep.subr.mxu0 0.0
    %610 = vmatpush2.msra.mxu0 0.0
    %611 = vmatprep.subr.mxu0 0.0
    %612 = vmatpush2.msra.mxu0 0.0
    %613 = vmatprep.subr.mxu0 0.0
    %614 = vmatpush2.msra.mxu0 0.0
    %615 = vmatprep.subr.mxu0 0.0
    %616 = vmatpush2.msra.mxu0 0.0
    %617 = vmatprep.subr.mxu0 0.0
    %618 = vmatpush2.msra.mxu0 0.0
    %619 = vmatprep.mubr.f32.mxu0 0.0
    %620 = vmatmul.mubr.f32.gmra.mxu0 %v553
    %v621 = vpop.f32.mrf.mxu0
    %v622 = vadd.f32 0.0, %v621
    %v623 = vpop.f32.mrf.mxu0
    %624 = vdwg.mxu0
    %v627 = vsel %vm478, %v475, %v466
    %v628 = vsel %vm435, %v627, 0
    %630 = vmatprep.subr.mxu0 0.0
    %631 = vmatpush1.msra.mxu0 0.0
    %632 = vmatprep.subr.mxu0 0.0
    %633 = vmatpush1.msra.mxu0 0.0
    %634 = vmatprep.subr.mxu0 0.0
    %635 = vmatpush1.msra.mxu0 0.0
    %636 = vmatprep.subr.mxu0 0.0
    %637 = vmatpush1.msra.mxu0 0.0
    %638 = vmatprep.subr.mxu0 0.0
    %639 = vmatpush1.msra.mxu0 0.0
    %640 = vmatprep.subr.mxu0 0.0
    %641 = vmatpush1.msra.mxu0 0.0
    %642 = vmatprep.subr.mxu0 0.0
    %643 = vmatpush1.msra.mxu0 0.0
    %644 = vmatprep.subr.mxu0 0.0
    %645 = vmatpush1.msra.mxu0 0.0
    %646 = vmatprep.subr.mxu0 0.0
    %647 = vmatpush1.msra.mxu0 0.0
    %648 = vmatprep.subr.mxu0 0.0
    %649 = vmatpush1.msra.mxu0 0.0
    %650 = vmatprep.subr.mxu0 0.0
    %651 = vmatpush1.msra.mxu0 0.0
    %652 = vmatprep.subr.mxu0 0.0
    %653 = vmatpush1.msra.mxu0 0.0
    %654 = vmatprep.subr.mxu0 0.0
    %655 = vmatpush1.msra.mxu0 0.0
    %656 = vmatprep.subr.mxu0 0.0
    %657 = vmatpush1.msra.mxu0 0.0
    %658 = vmatprep.subr.mxu0 0.0
    %659 = vmatpush1.msra.mxu0 %v191
    %660 = vmatprep.subr.mxu0 0.0
    %661 = vmatpush1.msra.mxu0 %v190
    %662 = vmatprep.subr.mxu0 0.0
    %663 = vmatpush2.msra.mxu0 0.0
    %664 = vmatprep.subr.mxu0 0.0
    %665 = vmatpush2.msra.mxu0 0.0
    %666 = vmatprep.subr.mxu0 0.0
    %667 = vmatpush2.msra.mxu0 0.0
    %668 = vmatprep.subr.mxu0 0.0
    %669 = vmatpush2.msra.mxu0 0.0
    %670 = vmatprep.subr.mxu0 0.0
    %671 = vmatpush2.msra.mxu0 0.0
    %672 = vmatprep.subr.mxu0 0.0
    %673 = vmatpush2.msra.mxu0 0.0
    %674 = vmatprep.subr.mxu0 0.0
    %675 = vmatpush2.msra.mxu0 0.0
    %676 = vmatprep.subr.mxu0 0.0
    %677 = vmatpush2.msra.mxu0 0.0
    %678 = vmatprep.subr.mxu0 0.0
    %679 = vmatpush2.msra.mxu0 0.0
    %680 = vmatprep.subr.mxu0 0.0
    %681 = vmatpush2.msra.mxu0 0.0
    %682 = vmatprep.subr.mxu0 0.0
    %683 = vmatpush2.msra.mxu0 0.0
    %684 = vmatprep.subr.mxu0 0.0
    %685 = vmatpush2.msra.mxu0 0.0
    %686 = vmatprep.subr.mxu0 0.0
    %687 = vmatpush2.msra.mxu0 0.0
    %688 = vmatprep.subr.mxu0 0.0
    %689 = vmatpush2.msra.mxu0 0.0
    %690 = vmatprep.subr.mxu0 0.0
    %691 = vmatpush2.msra.mxu0 0.0
    %692 = vmatprep.subr.mxu0 0.0
    %693 = vmatpush2.msra.mxu0 0.0
    %694 = vmatprep.mubr.f32.mxu0 0.0
    %695 = vmatmul.mubr.f32.gmra.mxu0 %v628
    %v696 = vpop.f32.mrf.mxu0
    %v697 = vadd.f32 0.0, %v696
    %v698 = vpop.f32.mrf.mxu0
    %699 = vdwg.mxu0
    %v701 = vsel %vm205, %v697, 0
    %703 = vmatprep.subr.mxu0 0.0
    %704 = vmatpush1.msra.mxu0 0.0
    %705 = vmatprep.subr.mxu0 0.0
    %706 = vmatpush1.msra.mxu0 0.0
    %707 = vmatprep.subr.mxu0 0.0
    %708 = vmatpush1.msra.mxu0 0.0
    %709 = vmatprep.subr.mxu0 0.0
    %710 = vmatpush1.msra.mxu0 0.0
    %711 = vmatprep.subr.mxu0 0.0
    %712 = vmatpush1.msra.mxu0 0.0
    %713 = vmatprep.subr.mxu0 0.0
    %714 = vmatpush1.msra.mxu0 0.0
    %715 = vmatprep.subr.mxu0 0.0
    %716 = vmatpush1.msra.mxu0 0.0
    %717 = vmatprep.subr.mxu0 0.0
    %718 = vmatpush1.msra.mxu0 0.0
    %719 = vmatprep.subr.mxu0 0.0
    %720 = vmatpush1.msra.mxu0 0.0
    %721 = vmatprep.subr.mxu0 0.0
    %722 = vmatpush1.msra.mxu0 0.0
    %723 = vmatprep.subr.mxu0 0.0
    %724 = vmatpush1.msra.mxu0 0.0
    %725 = vmatprep.subr.mxu0 0.0
    %726 = vmatpush1.msra.mxu0 0.0
    %727 = vmatprep.subr.mxu0 0.0
    %728 = vmatpush1.msra.mxu0 0.0
    %729 = vmatprep.subr.mxu0 0.0
    %730 = vmatpush1.msra.mxu0 0.0
    %731 = vmatprep.subr.mxu0 0.0
    %732 = vmatpush1.msra.mxu0 0.0
    %733 = vmatprep.subr.mxu0 0.0
    %734 = vmatpush1.msra.mxu0 %v192
    %735 = vmatprep.subr.mxu0 0.0
    %736 = vmatpush2.msra.mxu0 0.0
    %737 = vmatprep.subr.mxu0 0.0
    %738 = vmatpush2.msra.mxu0 0.0
    %739 = vmatprep.subr.mxu0 0.0
    %740 = vmatpush2.msra.mxu0 0.0
    %741 = vmatprep.subr.mxu0 0.0
    %742 = vmatpush2.msra.mxu0 0.0
    %743 = vmatprep.subr.mxu0 0.0
    %744 = vmatpush2.msra.mxu0 0.0
    %745 = vmatprep.subr.mxu0 0.0
    %746 = vmatpush2.msra.mxu0 0.0
    %747 = vmatprep.subr.mxu0 0.0
    %748 = vmatpush2.msra.mxu0 0.0
    %749 = vmatprep.subr.mxu0 0.0
    %750 = vmatpush2.msra.mxu0 0.0
    %751 = vmatprep.subr.mxu0 0.0
    %752 = vmatpush2.msra.mxu0 0.0
    %753 = vmatprep.subr.mxu0 0.0
    %754 = vmatpush2.msra.mxu0 0.0
    %755 = vmatprep.subr.mxu0 0.0
    %756 = vmatpush2.msra.mxu0 0.0
    %757 = vmatprep.subr.mxu0 0.0
    %758 = vmatpush2.msra.mxu0 0.0
    %759 = vmatprep.subr.mxu0 0.0
    %760 = vmatpush2.msra.mxu0 0.0
    %761 = vmatprep.subr.mxu0 0.0
    %762 = vmatpush2.msra.mxu0 0.0
    %763 = vmatprep.subr.mxu0 0.0
    %764 = vmatpush2.msra.mxu0 0.0
    %765 = vmatprep.subr.mxu0 0.0
    %766 = vmatpush2.msra.mxu0 0.0
    %767 = vmatprep.mubr.f32.mxu0 0.0
    %768 = vmatmul.mubr.f32.gmra.mxu0 %v701
    %v769 = vpop.f32.mrf.mxu0
    %v770 = vadd.f32 0.0, %v769
    %v771 = vpop.f32.mrf.mxu0
    %772 = vdwg.mxu0
    %v773 = vmul.f32 %v622, %v622
    %v774 = vsub.f32 %v770, %v773
    %v775 = vmax.f32 %v774, 0.0
    %v776 = vadd.f32 %v775, 1e-05
    %v777 = vrsqrt.pop %v776
    %v778 = vld [vmem:[#allocation7] sm:$0x1]
    %v780 = vlaneseq
    %v781 = vshrl.u32 %v780, 7
    %v782 = vsub.s32 0, %v781
    %v783 = vrot.slane %v778, %v782
    %v785 = vmul.f32 %v777, %v783
    %v786 = vld [vmem:[#allocation9] sm:$0x1]
    %v787 = vmul.f32 %v622, %v785
    %v789 = vlaneseq
    %v790 = vshrl.u32 %v789, 7
    %v791 = vsub.s32 0, %v790
    %v792 = vrot.slane %v786, %v791
    %v794 = vsub.f32 %v792, %v787
    %v797 = vunpack.c.l.s4 1966171168
    %v798 = vunpack.c.0.s8 %v797
    %v799 = vlaneseq
    %v800 = vshrl.u32 %v799, 7
    %v801 = vsub.s32 %v798, %v800
    %v802 = vrot.slane %v785, %v801
    %v803 = vcombine.high %v802, %v802
    %v805 = vunpack.c.l.s4 1966171168
    %v806 = vunpack.c.0.s8 %v805
    %v807 = vlaneseq
    %v808 = vshrl.u32 %v807, 7
    %v809 = vsub.s32 %v806, %v808
    %v810 = vrot.slane %v802, %v809
    %v812 = vunpack.c.l.s4 1966171168
    %v813 = vunpack.c.0.s8 %v812
    %v814 = vlaneseq
    %v815 = vshrl.u32 %v814, 7
    %v816 = vsub.s32 %v813, %v815
    %v817 = vrot.slane %v803, %v816
    %v818 = vlaneseq
    %v819 = vshrl.u32 %v818, 7
    %v820 = vsub.s32 0, %v819
    %v821 = vrot.slane %v810, %v820
    %v822 = vlaneseq
    %v823 = vshrl.u32 %v822, 7
    %v824 = vsub.s32 0, %v823
    %v825 = vrot.slane %v817, %v824
    %v828 = vmul.f32 %v431, %v821
    %v829 = vmul.f32 %v432, %v821
    %v830 = vmul.f32 %v433, %v825
    %v831 = vmul.f32 %v434, %v825
    %v834 = vunpack.c.l.s4 1966171168
    %v835 = vunpack.c.0.s8 %v834
    %v836 = vlaneseq
    %v837 = vshrl.u32 %v836, 7
    %v838 = vsub.s32 %v835, %v837
    %v839 = vrot.slane %v794, %v838
    %v840 = vcombine.high %v839, %v839
    %v842 = vunpack.c.l.s4 1966171168
    %v843 = vunpack.c.0.s8 %v842
    %v844 = vlaneseq
    %v845 = vshrl.u32 %v844, 7
    %v846 = vsub.s32 %v843, %v845
    %v847 = vrot.slane %v839, %v846
    %v849 = vunpack.c.l.s4 1966171168
    %v850 = vunpack.c.0.s8 %v849
    %v851 = vlaneseq
    %v852 = vshrl.u32 %v851, 7
    %v853 = vsub.s32 %v850, %v852
    %v854 = vrot.slane %v840, %v853
    %v855 = vlaneseq
    %v856 = vshrl.u32 %v855, 7
    %v857 = vsub.s32 0, %v856
    %v858 = vrot.slane %v847, %v857
    %v859 = vlaneseq
    %v860 = vshrl.u32 %v859, 7
    %v861 = vsub.s32 0, %v860
    %v862 = vrot.slane %v854, %v861
    %v865 = vadd.f32 %v828, %v858
    %v866 = vadd.f32 %v829, %v858
    %v867 = vadd.f32 %v830, %v862
    %v868 = vadd.f32 %v831, %v862
    %v869 = vmin.f32 %v865, 20.0
    %v870 = vmin.f32 %v866, 20.0
    %v871 = vmin.f32 %v867, 20.0
    %v872 = vmin.f32 %v868, 20.0
    %v873 = vmul.f32 %v869, 1.442695
    %v874 = vpow.pop %v873
    %v875 = vmul.f32 %v870, 1.442695
    %v876 = vpow.pop %v875
    %v877 = vmul.f32 %v871, 1.442695
    %v878 = vpow.pop %v877
    %v879 = vmul.f32 %v872, 1.442695
    %v880 = vpow.pop %v879
    %v881 = vadd.f32 %v874, 2.0
    %v882 = vadd.f32 %v876, 2.0
    %v883 = vadd.f32 %v878, 2.0
    %v884 = vadd.f32 %v880, 2.0
    %v885 = vmul.f32 %v874, %v881
    %v886 = vmul.f32 %v876, %v882
    %v887 = vmul.f32 %v878, %v883
    %v888 = vmul.f32 %v880, %v884
    %v889 = vadd.f32 %v885, 2.0
    %v890 = vadd.f32 %v886, 2.0
    %v891 = vadd.f32 %v887, 2.0
    %v892 = vadd.f32 %v888, 2.0
    %v893 = vrcp.pop %v889
    %v894 = vrcp.pop %v890
    %v895 = vrcp.pop %v891
    %v896 = vrcp.pop %v892
    %v897 = vmul.f32 %v885, %v893
    %v898 = vmul.f32 %v886, %v894
    %v899 = vmul.f32 %v887, %v895
    %v900 = vmul.f32 %v888, %v896
    %vm901 = vcmp.gt.f32.partialorder %v865, 20.0
    %vm902 = vcmp.gt.f32.partialorder %v866, 20.0
    %vm903 = vcmp.gt.f32.partialorder %v867, 20.0
    %vm904 = vcmp.gt.f32.partialorder %v868, 20.0
    %v905 = vmul.f32 %v865, %v897
    %v906 = vmul.f32 %v866, %v898
    %v907 = vmul.f32 %v867, %v899
    %v908 = vmul.f32 %v868, %v900
    %v909 = vsel %vm901, %v865, %v905
    %v910 = vsel %vm902, %v866, %v906
    %v911 = vsel %vm903, %v867, %v907
    %v912 = vsel %vm904, %v868, %v908
    %v913 = vld [vmem:[#allocation2] sm:$0x3]
    %v916 = vunpack.c.l.s4 1966171168
    %v917 = vunpack.c.0.s8 %v916
    %v918 = vlaneseq
    %v919 = vshrl.u32 %v918, 7
    %v920 = vsub.s32 %v917, %v919
    %v921 = vrot.slane %v913, %v920
    %v922 = vcombine.high %v921, %v921
    %v924 = vunpack.c.l.s4 1966171168
    %v925 = vunpack.c.0.s8 %v924
    %v926 = vlaneseq
    %v927 = vshrl.u32 %v926, 7
    %v928 = vsub.s32 %v925, %v927
    %v929 = vrot.slane %v921, %v928
    %v931 = vunpack.c.l.s4 1966171168
    %v932 = vunpack.c.0.s8 %v931
    %v933 = vlaneseq
    %v934 = vshrl.u32 %v933, 7
    %v935 = vsub.s32 %v932, %v934
    %v936 = vrot.slane %v922, %v935
    %v937 = vlaneseq
    %v938 = vshrl.u32 %v937, 7
    %v939 = vsub.s32 0, %v938
    %v940 = vrot.slane %v929, %v939
    %v941 = vlaneseq
    %v942 = vshrl.u32 %v941, 7
    %v943 = vsub.s32 0, %v942
    %v944 = vrot.slane %v936, %v943
    %v947 = vmul.f32 %v909, %v940
    %v948 = vmul.f32 %v910, %v940
    %v949 = vmul.f32 %v911, %v944
    %v950 = vmul.f32 %v912, %v944
    %v951 = vld [vmem:[#allocation4] sm:$0x3]
    %v954 = vunpack.c.l.s4 1966171168
    %v955 = vunpack.c.0.s8 %v954
    %v956 = vlaneseq
    %v957 = vshrl.u32 %v956, 7
    %v958 = vsub.s32 %v955, %v957
    %v959 = vrot.slane %v951, %v958
    %v960 = vcombine.high %v959, %v959
    %v962 = vunpack.c.l.s4 1966171168
    %v963 = vunpack.c.0.s8 %v962
    %v964 = vlaneseq
    %v965 = vshrl.u32 %v964, 7
    %v966 = vsub.s32 %v963, %v965
    %v967 = vrot.slane %v959, %v966
    %v969 = vunpack.c.l.s4 1966171168
    %v970 = vunpack.c.0.s8 %v969
    %v971 = vlaneseq
    %v972 = vshrl.u32 %v971, 7
    %v973 = vsub.s32 %v970, %v972
    %v974 = vrot.slane %v960, %v973
    %v975 = vlaneseq
    %v976 = vshrl.u32 %v975, 7
    %v977 = vsub.s32 0, %v976
    %v978 = vrot.slane %v967, %v977
    %v979 = vlaneseq
    %v980 = vshrl.u32 %v979, 7
    %v981 = vsub.s32 0, %v980
    %v982 = vrot.slane %v974, %v981
    %v985 = vadd.f32 %v947, %v978
    %v986 = vadd.f32 %v948, %v978
    %v987 = vadd.f32 %v949, %v982
    %v988 = vadd.f32 %v950, %v982
    %v989 = vpack.c.bf16 %v986, %v985
    %v990 = vpack.c.bf16 %v988, %v987
    %v991 = vld [vmem:[%s8] sm:$0x1]
    %v992 = vld [vmem:[%s7] sm:$0xf]
    %v993 = vld [vmem:[%s7 + $0x4] sm:$0xf]
    %v996 = vunpack.c.l.b16 %v992
    %v997 = vunpack.c.l.b16 %v993
    %v998 = vpack.c.b16 %v997, %v996
    %v1001 = vsel %vm435, %v989, 0
    %v1004 = vsel %vm435, %v990, 0
    %1006 = vmatprep.subr.bf16.mxu0 0
    %1007 = vmatpush1.bf16.msra.mxu0 0
    %1008 = vmatprep.subr.bf16.mxu0 0
    %1009 = vmatpush1.bf16.msra.mxu0 0
    %1010 = vmatprep.subr.bf16.mxu0 0
    %1011 = vmatpush1.bf16.msra.mxu0 0
    %1012 = vmatprep.subr.bf16.mxu0 0
    %1013 = vmatpush1.bf16.msra.mxu0 0
    %1014 = vmatprep.subr.bf16.mxu0 0
    %1015 = vmatpush1.bf16.msra.mxu0 0
    %1016 = vmatprep.subr.bf16.mxu0 0
    %1017 = vmatpush1.bf16.msra.mxu0 0
    %1018 = vmatprep.subr.bf16.mxu0 0
    %1019 = vmatpush1.bf16.msra.mxu0 0
    %1020 = vmatprep.subr.bf16.mxu0 0
    %1021 = vmatpush1.bf16.msra.mxu0 %v998
    %1022 = vmatprep.subr.bf16.mxu0 0
    %1023 = vmatpush2.bf16.msra.mxu0 0
    %1024 = vmatprep.subr.bf16.mxu0 0
    %1025 = vmatpush2.bf16.msra.mxu0 0
    %1026 = vmatprep.subr.bf16.mxu0 0
    %1027 = vmatpush2.bf16.msra.mxu0 0
    %1028 = vmatprep.subr.bf16.mxu0 0
    %1029 = vmatpush2.bf16.msra.mxu0 0
    %1030 = vmatprep.subr.bf16.mxu0 0
    %1031 = vmatpush2.bf16.msra.mxu0 0
    %1032 = vmatprep.subr.bf16.mxu0 0
    %1033 = vmatpush2.bf16.msra.mxu0 0
    %1034 = vmatprep.subr.bf16.mxu0 0
    %1035 = vmatpush2.bf16.msra.mxu0 0
    %1036 = vmatprep.subr.bf16.mxu0 0
    %1037 = vmatpush2.bf16.msra.mxu0 0
    %1038 = vmatprep.mubr.bf16.mxu0 0
    %1039 = vmatmul.mubr.bf16.gmra.mxu0 %v1001
    %v1040 = vpop.f32.mrf.mxu0
    %v1041 = vadd.f32 0.0, %v1040
    %v1042 = vpop.f32.mrf.mxu0
    %v1043 = vpop.f32.mrf.mxu0
    %v1044 = vadd.f32 0.0, %v1043
    %v1045 = vpop.f32.mrf.mxu0
    %1046 = vmatprep.mubr.bf16.mxu0 0
    %1047 = vmatmul.mubr.bf16.gmra.mxu0 %v1004
    %v1048 = vpop.f32.mrf.mxu0
    %v1049 = vadd.f32 0.0, %v1048
    %v1050 = vpop.f32.mrf.mxu0
    %v1051 = vpop.f32.mrf.mxu0
    %v1052 = vadd.f32 0.0, %v1051
    %v1053 = vpop.f32.mrf.mxu0
    %1054 = vdwg.mxu0
    %s1055 = scalar_lea.vmem %s7, 8
    %v1056 = vld [vmem:[%s1055] sm:$0xf]
    %v1057 = vld [vmem:[%s1055 + $0x4] sm:$0xf]
    %v1060 = vunpack.c.l.b16 %v1056
    %v1061 = vunpack.c.l.b16 %v1057
    %v1062 = vpack.c.b16 %v1061, %v1060
    %1064 = vmatprep.subr.bf16.mxu0 0
    %1065 = vmatpush1.bf16.msra.mxu0 0
    %1066 = vmatprep.subr.bf16.mxu0 0
    %1067 = vmatpush1.bf16.msra.mxu0 0
    %1068 = vmatprep.subr.bf16.mxu0 0
    %1069 = vmatpush1.bf16.msra.mxu0 0
    %1070 = vmatprep.subr.bf16.mxu0 0
    %1071 = vmatpush1.bf16.msra.mxu0 0
    %1072 = vmatprep.subr.bf16.mxu0 0
    %1073 = vmatpush1.bf16.msra.mxu0 0
    %1074 = vmatprep.subr.bf16.mxu0 0
    %1075 = vmatpush1.bf16.msra.mxu0 0
    %1076 = vmatprep.subr.bf16.mxu0 0
    %1077 = vmatpush1.bf16.msra.mxu0 0
    %1078 = vmatprep.subr.bf16.mxu0 0
    %1079 = vmatpush1.bf16.msra.mxu0 %v1062
    %1080 = vmatprep.subr.bf16.mxu0 0
    %1081 = vmatpush2.bf16.msra.mxu0 0
    %1082 = vmatprep.subr.bf16.mxu0 0
    %1083 = vmatpush2.bf16.msra.mxu0 0
    %1084 = vmatprep.subr.bf16.mxu0 0
    %1085 = vmatpush2.bf16.msra.mxu0 0
    %1086 = vmatprep.subr.bf16.mxu0 0
    %1087 = vmatpush2.bf16.msra.mxu0 0
    %1088 = vmatprep.subr.bf16.mxu0 0
    %1089 = vmatpush2.bf16.msra.mxu0 0
    %1090 = vmatprep.subr.bf16.mxu0 0
    %1091 = vmatpush2.bf16.msra.mxu0 0
    %1092 = vmatprep.subr.bf16.mxu0 0
    %1093 = vmatpush2.bf16.msra.mxu0 0
    %1094 = vmatprep.subr.bf16.mxu0 0
    %1095 = vmatpush2.bf16.msra.mxu0 0
    %1096 = vmatprep.mubr.bf16.mxu0 0
    %1097 = vmatmul.mubr.bf16.gmra.mxu0 %v1001
    %v1098 = vpop.f32.mrf.mxu0
    %v1099 = vadd.f32 0.0, %v1098
    %v1100 = vpop.f32.mrf.mxu0
    %v1101 = vpop.f32.mrf.mxu0
    %v1102 = vadd.f32 0.0, %v1101
    %v1103 = vpop.f32.mrf.mxu0
    %1104 = vmatprep.mubr.bf16.mxu0 0
    %1105 = vmatmul.mubr.bf16.gmra.mxu0 %v1004
    %v1106 = vpop.f32.mrf.mxu0
    %v1107 = vadd.f32 0.0, %v1106
    %v1108 = vpop.f32.mrf.mxu0
    %v1109 = vpop.f32.mrf.mxu0
    %v1110 = vadd.f32 0.0, %v1109
    %v1111 = vpop.f32.mrf.mxu0
    %1112 = vdwg.mxu0
    %s1113 = scalar_lea.vmem %s7, 16
    %v1114 = vld [vmem:[%s1113] sm:$0xf]
    %v1115 = vld [vmem:[%s1113 + $0x4] sm:$0xf]
    %v1118 = vunpack.c.l.b16 %v1114
    %v1119 = vunpack.c.l.b16 %v1115
    %v1120 = vpack.c.b16 %v1119, %v1118
    %1122 = vmatprep.subr.bf16.mxu0 0
    %1123 = vmatpush1.bf16.msra.mxu0 0
    %1124 = vmatprep.subr.bf16.mxu0 0
    %1125 = vmatpush1.bf16.msra.mxu0 0
    %1126 = vmatprep.subr.bf16.mxu0 0
    %1127 = vmatpush1.bf16.msra.mxu0 0
    %1128 = vmatprep.subr.bf16.mxu0 0
    %1129 = vmatpush1.bf16.msra.mxu0 0
    %1130 = vmatprep.subr.bf16.mxu0 0
    %1131 = vmatpush1.bf16.msra.mxu0 0
    %1132 = vmatprep.subr.bf16.mxu0 0
    %1133 = vmatpush1.bf16.msra.mxu0 0
    %1134 = vmatprep.subr.bf16.mxu0 0
    %1135 = vmatpush1.bf16.msra.mxu0 0
    %1136 = vmatprep.subr.bf16.mxu0 0
    %1137 = vmatpush1.bf16.msra.mxu0 %v1120
    %1138 = vmatprep.subr.bf16.mxu0 0
    %1139 = vmatpush2.bf16.msra.mxu0 0
    %1140 = vmatprep.subr.bf16.mxu0 0
    %1141 = vmatpush2.bf16.msra.mxu0 0
    %1142 = vmatprep.subr.bf16.mxu0 0
    %1143 = vmatpush2.bf16.msra.mxu0 0
    %1144 = vmatprep.subr.bf16.mxu0 0
    %1145 = vmatpush2.bf16.msra.mxu0 0
    %1146 = vmatprep.subr.bf16.mxu0 0
    %1147 = vmatpush2.bf16.msra.mxu0 0
    %1148 = vmatprep.subr.bf16.mxu0 0
    %1149 = vmatpush2.bf16.msra.mxu0 0
    %1150 = vmatprep.subr.bf16.mxu0 0
    %1151 = vmatpush2.bf16.msra.mxu0 0
    %1152 = vmatprep.subr.bf16.mxu0 0
    %1153 = vmatpush2.bf16.msra.mxu0 0
    %1154 = vmatprep.mubr.bf16.mxu0 0
    %1155 = vmatmul.mubr.bf16.gmra.mxu0 %v1001
    %v1156 = vpop.f32.mrf.mxu0
    %v1157 = vadd.f32 0.0, %v1156
    %v1158 = vpop.f32.mrf.mxu0
    %v1159 = vpop.f32.mrf.mxu0
    %v1160 = vadd.f32 0.0, %v1159
    %v1161 = vpop.f32.mrf.mxu0
    %1162 = vmatprep.mubr.bf16.mxu0 0
    %1163 = vmatmul.mubr.bf16.gmra.mxu0 %v1004
    %v1164 = vpop.f32.mrf.mxu0
    %v1165 = vadd.f32 0.0, %v1164
    %v1166 = vpop.f32.mrf.mxu0
    %v1167 = vpop.f32.mrf.mxu0
    %v1168 = vadd.f32 0.0, %v1167
    %v1169 = vpop.f32.mrf.mxu0
    %1170 = vdwg.mxu0
    %v1172 = vrot.slane %v1052, 7
    %v1177 = vrot.slane %v1041, 7
    %v1178 = vrot.slane %v1044, 7
    %v1179 = vsel %vm379, %v1177, %v1178
    %v1180 = vrot.slane %v1049, 7
    %v1181 = vsel %vm379, %v1178, %v1180
    %v1182 = vsel %vm379, %v1180, %v1172
    %v1187 = vsel %vm379, %v1172, %v1177
    %v1188 = vmul.f32 %v1187, %v170
    %v1189 = vmul.f32 %v1179, %v171
    %v1190 = vmul.f32 %v1181, %v172
    %v1191 = vmul.f32 %v1182, %v173
    %v1192 = vadd.f32 %v1188, %v1099
    %v1193 = vadd.f32 %v1189, %v1102
    %v1194 = vadd.f32 %v1190, %v1107
    %v1195 = vadd.f32 %v1191, %v1110
    %v1200 = vrot.slane %v1157, 1
    %v1201 = vrot.slane %v1160, 1
    %v1202 = vsel %vm403, %v1200, %v1201
    %v1203 = vrot.slane %v1165, 1
    %v1204 = vsel %vm403, %v1201, %v1203
    %v1205 = vrot.slane %v1168, 1
    %v1206 = vsel %vm403, %v1203, %v1205
    %v1212 = vsel %vm403, %v1205, %v1200
    %v1213 = vmul.f32 %v1202, %v182
    %v1214 = vmul.f32 %v1204, %v183
    %v1215 = vmul.f32 %v1206, %v184
    %v1216 = vmul.f32 %v1212, %v185
    %v1217 = vadd.f32 %v1192, %v1213
    %v1218 = vadd.f32 %v1193, %v1214
    %v1219 = vadd.f32 %v1194, %v1215
    %v1220 = vadd.f32 %v1195, %v1216
    %v1222 = vlaneseq
    %v1223 = vshrl.u32 %v1222, 7
    %v1224 = vsub.s32 0, %v1223
    %v1225 = vrot.slane %v991, %v1224
    %v1227 = vadd.f32 %v1217, %v1225
    %v1228 = vadd.f32 %v1218, %v1225
    %v1229 = vadd.f32 %v1219, %v1225
    %v1230 = vadd.f32 %v1220, %v1225
    %v1231 = vsel %vm435, %v1227, 0.0
    %v1232 = vsel %vm435, %v1228, 0.0
    %v1233 = vadd.f32 %v1231, %v1232
    %v1234 = vrot.slane %v1233, 4
    %v1235 = vadd.f32 %v1233, %v1234
    %v1236 = vrot.slane %v1235, 2
    %v1237 = vadd.f32 %v1235, %v1236
    %v1238 = vrot.slane %v1237, 1
    %v1239 = vadd.f32 %v1237, %v1238
    %v1240 = vsel %vm435, %v1229, 0.0
    %v1241 = vsel %vm435, %v1230, 0.0
    %v1242 = vadd.f32 %v1240, %v1241
    %v1243 = vrot.slane %v1242, 4
    %v1244 = vadd.f32 %v1242, %v1243
    %v1245 = vrot.slane %v1244, 2
    %v1246 = vadd.f32 %v1244, %v1245
    %v1247 = vrot.slane %v1246, 1
    %v1248 = vadd.f32 %v1246, %v1247
    %v1249 = vmul.f32 %v1227, %v1227
    %v1250 = vmul.f32 %v1228, %v1228
    %v1251 = vmul.f32 %v1229, %v1229
    %v1252 = vmul.f32 %v1230, %v1230
    %v1253 = vsel %vm435, %v1249, 0.0
    %v1254 = vsel %vm435, %v1250, 0.0
    %v1255 = vadd.f32 %v1253, %v1254
    %v1256 = vrot.slane %v1255, 4
    %v1257 = vadd.f32 %v1255, %v1256
    %v1258 = vrot.slane %v1257, 2
    %v1259 = vadd.f32 %v1257, %v1258
    %v1260 = vrot.slane %v1259, 1
    %v1261 = vadd.f32 %v1259, %v1260
    %v1262 = vsel %vm435, %v1251, 0.0
    %v1263 = vsel %vm435, %v1252, 0.0
    %v1264 = vadd.f32 %v1262, %v1263
    %v1265 = vrot.slane %v1264, 4
    %v1266 = vadd.f32 %v1264, %v1265
    %v1267 = vrot.slane %v1266, 2
    %v1268 = vadd.f32 %v1266, %v1267
    %v1269 = vrot.slane %v1268, 1
    %v1270 = vadd.f32 %v1268, %v1269
    %v1273 = vsel %vm478, %v1248, %v1239
    %v1274 = vsel %vm435, %v1273, 0
    %1276 = vmatprep.subr.mxu0 0.0
    %1277 = vmatpush1.msra.mxu0 0.0
    %1278 = vmatprep.subr.mxu0 0.0
    %1279 = vmatpush1.msra.mxu0 0.0
    %1280 = vmatprep.subr.mxu0 0.0
    %1281 = vmatpush1.msra.mxu0 0.0
    %1282 = vmatprep.subr.mxu0 0.0
    %1283 = vmatpush1.msra.mxu0 0.0
    %1284 = vmatprep.subr.mxu0 0.0
    %1285 = vmatpush1.msra.mxu0 0.0
    %1286 = vmatprep.subr.mxu0 0.0
    %1287 = vmatpush1.msra.mxu0 0.0
    %1288 = vmatprep.subr.mxu0 0.0
    %1289 = vmatpush1.msra.mxu0 0.0
    %1290 = vmatprep.subr.mxu0 0.0
    %1291 = vmatpush1.msra.mxu0 0.0
    %1292 = vmatprep.subr.mxu0 0.0
    %1293 = vmatpush1.msra.mxu0 0.0
    %1294 = vmatprep.subr.mxu0 0.0
    %1295 = vmatpush1.msra.mxu0 0.0
    %1296 = vmatprep.subr.mxu0 0.0
    %1297 = vmatpush1.msra.mxu0 0.0
    %1298 = vmatprep.subr.mxu0 0.0
    %1299 = vmatpush1.msra.mxu0 0.0
    %1300 = vmatprep.subr.mxu0 0.0
    %1301 = vmatpush1.msra.mxu0 0.0
    %1302 = vmatprep.subr.mxu0 0.0
    %1303 = vmatpush1.msra.mxu0 0.0
    %1304 = vmatprep.subr.mxu0 0.0
    %1305 = vmatpush1.msra.mxu0 %v191
    %1306 = vmatprep.subr.mxu0 0.0
    %1307 = vmatpush1.msra.mxu0 %v190
    %1308 = vmatprep.subr.mxu0 0.0
    %1309 = vmatpush2.msra.mxu0 0.0
    %1310 = vmatprep.subr.mxu0 0.0
    %1311 = vmatpush2.msra.mxu0 0.0
    %1312 = vmatprep.subr.mxu0 0.0
    %1313 = vmatpush2.msra.mxu0 0.0
    %1314 = vmatprep.subr.mxu0 0.0
    %1315 = vmatpush2.msra.mxu0 0.0
    %1316 = vmatprep.subr.mxu0 0.0
    %1317 = vmatpush2.msra.mxu0 0.0
    %1318 = vmatprep.subr.mxu0 0.0
    %1319 = vmatpush2.msra.mxu0 0.0
    %1320 = vmatprep.subr.mxu0 0.0
    %1321 = vmatpush2.msra.mxu0 0.0
    %1322 = vmatprep.subr.mxu0 0.0
    %1323 = vmatpush2.msra.mxu0 0.0
    %1324 = vmatprep.subr.mxu0 0.0
    %1325 = vmatpush2.msra.mxu0 0.0
    %1326 = vmatprep.subr.mxu0 0.0
    %1327 = vmatpush2.msra.mxu0 0.0
    %1328 = vmatprep.subr.mxu0 0.0
    %1329 = vmatpush2.msra.mxu0 0.0
    %1330 = vmatprep.subr.mxu0 0.0
    %1331 = vmatpush2.msra.mxu0 0.0
    %1332 = vmatprep.subr.mxu0 0.0
    %1333 = vmatpush2.msra.mxu0 0.0
    %1334 = vmatprep.subr.mxu0 0.0
    %1335 = vmatpush2.msra.mxu0 0.0
    %1336 = vmatprep.subr.mxu0 0.0
    %1337 = vmatpush2.msra.mxu0 0.0
    %1338 = vmatprep.subr.mxu0 0.0
    %1339 = vmatpush2.msra.mxu0 0.0
    %1340 = vmatprep.mubr.f32.mxu0 0.0
    %1341 = vmatmul.mubr.f32.gmra.mxu0 %v1274
    %v1342 = vpop.f32.mrf.mxu0
    %v1343 = vadd.f32 0.0, %v1342
    %v1344 = vpop.f32.mrf.mxu0
    %1345 = vdwg.mxu0
    %v1347 = vsel %vm205, %v1343, 0
    %1349 = vmatprep.subr.mxu0 0.0
    %1350 = vmatpush1.msra.mxu0 0.0
    %1351 = vmatprep.subr.mxu0 0.0
    %1352 = vmatpush1.msra.mxu0 0.0
    %1353 = vmatprep.subr.mxu0 0.0
    %1354 = vmatpush1.msra.mxu0 0.0
    %1355 = vmatprep.subr.mxu0 0.0
    %1356 = vmatpush1.msra.mxu0 0.0
    %1357 = vmatprep.subr.mxu0 0.0
    %1358 = vmatpush1.msra.mxu0 0.0
    %1359 = vmatprep.subr.mxu0 0.0
    %1360 = vmatpush1.msra.mxu0 0.0
    %1361 = vmatprep.subr.mxu0 0.0
    %1362 = vmatpush1.msra.mxu0 0.0
    %1363 = vmatprep.subr.mxu0 0.0
    %1364 = vmatpush1.msra.mxu0 0.0
    %1365 = vmatprep.subr.mxu0 0.0
    %1366 = vmatpush1.msra.mxu0 0.0
    %1367 = vmatprep.subr.mxu0 0.0
    %1368 = vmatpush1.msra.mxu0 0.0
    %1369 = vmatprep.subr.mxu0 0.0
    %1370 = vmatpush1.msra.mxu0 0.0
    %1371 = vmatprep.subr.mxu0 0.0
    %1372 = vmatpush1.msra.mxu0 0.0
    %1373 = vmatprep.subr.mxu0 0.0
    %1374 = vmatpush1.msra.mxu0 0.0
    %1375 = vmatprep.subr.mxu0 0.0
    %1376 = vmatpush1.msra.mxu0 0.0
    %1377 = vmatprep.subr.mxu0 0.0
    %1378 = vmatpush1.msra.mxu0 0.0
    %1379 = vmatprep.subr.mxu0 0.0
    %1380 = vmatpush1.msra.mxu0 %v192
    %1381 = vmatprep.subr.mxu0 0.0
    %1382 = vmatpush2.msra.mxu0 0.0
    %1383 = vmatprep.subr.mxu0 0.0
    %1384 = vmatpush2.msra.mxu0 0.0
    %1385 = vmatprep.subr.mxu0 0.0
    %1386 = vmatpush2.msra.mxu0 0.0
    %1387 = vmatprep.subr.mxu0 0.0
    %1388 = vmatpush2.msra.mxu0 0.0
    %1389 = vmatprep.subr.mxu0 0.0
    %1390 = vmatpush2.msra.mxu0 0.0
    %1391 = vmatprep.subr.mxu0 0.0
    %1392 = vmatpush2.msra.mxu0 0.0
    %1393 = vmatprep.subr.mxu0 0.0
    %1394 = vmatpush2.msra.mxu0 0.0
    %1395 = vmatprep.subr.mxu0 0.0
    %1396 = vmatpush2.msra.mxu0 0.0
    %1397 = vmatprep.subr.mxu0 0.0
    %1398 = vmatpush2.msra.mxu0 0.0
    %1399 = vmatprep.subr.mxu0 0.0
    %1400 = vmatpush2.msra.mxu0 0.0
    %1401 = vmatprep.subr.mxu0 0.0
    %1402 = vmatpush2.msra.mxu0 0.0
    %1403 = vmatprep.subr.mxu0 0.0
    %1404 = vmatpush2.msra.mxu0 0.0
    %1405 = vmatprep.subr.mxu0 0.0
    %1406 = vmatpush2.msra.mxu0 0.0
    %1407 = vmatprep.subr.mxu0 0.0
    %1408 = vmatpush2.msra.mxu0 0.0
    %1409 = vmatprep.subr.mxu0 0.0
    %1410 = vmatpush2.msra.mxu0 0.0
    %1411 = vmatprep.subr.mxu0 0.0
    %1412 = vmatpush2.msra.mxu0 0.0
    %1413 = vmatprep.mubr.f32.mxu0 0.0
    %1414 = vmatmul.mubr.f32.gmra.mxu0 %v1347
    %v1415 = vpop.f32.mrf.mxu0
    %v1416 = vadd.f32 0.0, %v1415
    %v1417 = vpop.f32.mrf.mxu0
    %1418 = vdwg.mxu0
    %v1421 = vsel %vm478, %v1270, %v1261
    %v1422 = vsel %vm435, %v1421, 0
    %1424 = vmatprep.subr.mxu0 0.0
    %1425 = vmatpush1.msra.mxu0 0.0
    %1426 = vmatprep.subr.mxu0 0.0
    %1427 = vmatpush1.msra.mxu0 0.0
    %1428 = vmatprep.subr.mxu0 0.0
    %1429 = vmatpush1.msra.mxu0 0.0
    %1430 = vmatprep.subr.mxu0 0.0
    %1431 = vmatpush1.msra.mxu0 0.0
    %1432 = vmatprep.subr.mxu0 0.0
    %1433 = vmatpush1.msra.mxu0 0.0
    %1434 = vmatprep.subr.mxu0 0.0
    %1435 = vmatpush1.msra.mxu0 0.0
    %1436 = vmatprep.subr.mxu0 0.0
    %1437 = vmatpush1.msra.mxu0 0.0
    %1438 = vmatprep.subr.mxu0 0.0
    %1439 = vmatpush1.msra.mxu0 0.0
    %1440 = vmatprep.subr.mxu0 0.0
    %1441 = vmatpush1.msra.mxu0 0.0
    %1442 = vmatprep.subr.mxu0 0.0
    %1443 = vmatpush1.msra.mxu0 0.0
    %1444 = vmatprep.subr.mxu0 0.0
    %1445 = vmatpush1.msra.mxu0 0.0
    %1446 = vmatprep.subr.mxu0 0.0
    %1447 = vmatpush1.msra.mxu0 0.0
    %1448 = vmatprep.subr.mxu0 0.0
    %1449 = vmatpush1.msra.mxu0 0.0
    %1450 = vmatprep.subr.mxu0 0.0
    %1451 = vmatpush1.msra.mxu0 0.0
    %1452 = vmatprep.subr.mxu0 0.0
    %1453 = vmatpush1.msra.mxu0 %v191
    %1454 = vmatprep.subr.mxu0 0.0
    %1455 = vmatpush1.msra.mxu0 %v190
    %1456 = vmatprep.subr.mxu0 0.0
    %1457 = vmatpush2.msra.mxu0 0.0
    %1458 = vmatprep.subr.mxu0 0.0
    %1459 = vmatpush2.msra.mxu0 0.0
    %1460 = vmatprep.subr.mxu0 0.0
    %1461 = vmatpush2.msra.mxu0 0.0
    %1462 = vmatprep.subr.mxu0 0.0
    %1463 = vmatpush2.msra.mxu0 0.0
    %1464 = vmatprep.subr.mxu0 0.0
    %1465 = vmatpush2.msra.mxu0 0.0
    %1466 = vmatprep.subr.mxu0 0.0
    %1467 = vmatpush2.msra.mxu0 0.0
    %1468 = vmatprep.subr.mxu0 0.0
    %1469 = vmatpush2.msra.mxu0 0.0
    %1470 = vmatprep.subr.mxu0 0.0
    %1471 = vmatpush2.msra.mxu0 0.0
    %1472 = vmatprep.subr.mxu0 0.0
    %1473 = vmatpush2.msra.mxu0 0.0
    %1474 = vmatprep.subr.mxu0 0.0
    %1475 = vmatpush2.msra.mxu0 0.0
    %1476 = vmatprep.subr.mxu0 0.0
    %1477 = vmatpush2.msra.mxu0 0.0
    %1478 = vmatprep.subr.mxu0 0.0
    %1479 = vmatpush2.msra.mxu0 0.0
    %1480 = vmatprep.subr.mxu0 0.0
    %1481 = vmatpush2.msra.mxu0 0.0
    %1482 = vmatprep.subr.mxu0 0.0
    %1483 = vmatpush2.msra.mxu0 0.0
    %1484 = vmatprep.subr.mxu0 0.0
    %1485 = vmatpush2.msra.mxu0 0.0
    %1486 = vmatprep.subr.mxu0 0.0
    %1487 = vmatpush2.msra.mxu0 0.0
    %1488 = vmatprep.mubr.f32.mxu0 0.0
    %1489 = vmatmul.mubr.f32.gmra.mxu0 %v1422
    %v1490 = vpop.f32.mrf.mxu0
    %v1491 = vadd.f32 0.0, %v1490
    %v1492 = vpop.f32.mrf.mxu0
    %1493 = vdwg.mxu0
    %v1495 = vsel %vm205, %v1491, 0
    %1497 = vmatprep.subr.mxu0 0.0
    %1498 = vmatpush1.msra.mxu0 0.0
    %1499 = vmatprep.subr.mxu0 0.0
    %1500 = vmatpush1.msra.mxu0 0.0
    %1501 = vmatprep.subr.mxu0 0.0
    %1502 = vmatpush1.msra.mxu0 0.0
    %1503 = vmatprep.subr.mxu0 0.0
    %1504 = vmatpush1.msra.mxu0 0.0
    %1505 = vmatprep.subr.mxu0 0.0
    %1506 = vmatpush1.msra.mxu0 0.0
    %1507 = vmatprep.subr.mxu0 0.0
    %1508 = vmatpush1.msra.mxu0 0.0
    %1509 = vmatprep.subr.mxu0 0.0
    %1510 = vmatpush1.msra.mxu0 0.0
    %1511 = vmatprep.subr.mxu0 0.0
    %1512 = vmatpush1.msra.mxu0 0.0
    %1513 = vmatprep.subr.mxu0 0.0
    %1514 = vmatpush1.msra.mxu0 0.0
    %1515 = vmatprep.subr.mxu0 0.0
    %1516 = vmatpush1.msra.mxu0 0.0
    %1517 = vmatprep.subr.mxu0 0.0
    %1518 = vmatpush1.msra.mxu0 0.0
    %1519 = vmatprep.subr.mxu0 0.0
    %1520 = vmatpush1.msra.mxu0 0.0
    %1521 = vmatprep.subr.mxu0 0.0
    %1522 = vmatpush1.msra.mxu0 0.0
    %1523 = vmatprep.subr.mxu0 0.0
    %1524 = vmatpush1.msra.mxu0 0.0
    %1525 = vmatprep.subr.mxu0 0.0
    %1526 = vmatpush1.msra.mxu0 0.0
    %1527 = vmatprep.subr.mxu0 0.0
    %1528 = vmatpush1.msra.mxu0 %v192
    %1529 = vmatprep.subr.mxu0 0.0
    %1530 = vmatpush2.msra.mxu0 0.0
    %1531 = vmatprep.subr.mxu0 0.0
    %1532 = vmatpush2.msra.mxu0 0.0
    %1533 = vmatprep.subr.mxu0 0.0
    %1534 = vmatpush2.msra.mxu0 0.0
    %1535 = vmatprep.subr.mxu0 0.0
    %1536 = vmatpush2.msra.mxu0 0.0
    %1537 = vmatprep.subr.mxu0 0.0
    %1538 = vmatpush2.msra.mxu0 0.0
    %1539 = vmatprep.subr.mxu0 0.0
    %1540 = vmatpush2.msra.mxu0 0.0
    %1541 = vmatprep.subr.mxu0 0.0
    %1542 = vmatpush2.msra.mxu0 0.0
    %1543 = vmatprep.subr.mxu0 0.0
    %1544 = vmatpush2.msra.mxu0 0.0
    %1545 = vmatprep.subr.mxu0 0.0
    %1546 = vmatpush2.msra.mxu0 0.0
    %1547 = vmatprep.subr.mxu0 0.0
    %1548 = vmatpush2.msra.mxu0 0.0
    %1549 = vmatprep.subr.mxu0 0.0
    %1550 = vmatpush2.msra.mxu0 0.0
    %1551 = vmatprep.subr.mxu0 0.0
    %1552 = vmatpush2.msra.mxu0 0.0
    %1553 = vmatprep.subr.mxu0 0.0
    %1554 = vmatpush2.msra.mxu0 0.0
    %1555 = vmatprep.subr.mxu0 0.0
    %1556 = vmatpush2.msra.mxu0 0.0
    %1557 = vmatprep.subr.mxu0 0.0
    %1558 = vmatpush2.msra.mxu0 0.0
    %1559 = vmatprep.subr.mxu0 0.0
    %1560 = vmatpush2.msra.mxu0 0.0
    %1561 = vmatprep.mubr.f32.mxu0 0.0
    %1562 = vmatmul.mubr.f32.gmra.mxu0 %v1495
    %v1563 = vpop.f32.mrf.mxu0
    %v1564 = vadd.f32 0.0, %v1563
    %v1565 = vpop.f32.mrf.mxu0
    %1566 = vdwg.mxu0
    %v1567 = vmul.f32 %v1416, %v1416
    %v1568 = vsub.f32 %v1564, %v1567
    %v1569 = vmax.f32 %v1568, 0.0
    %v1570 = vadd.f32 %v1569, 1e-05
    %v1571 = vrsqrt.pop %v1570
    %v1572 = vld [vmem:[%s9] sm:$0x1]
    %v1574 = vlaneseq
    %v1575 = vshrl.u32 %v1574, 7
    %v1576 = vsub.s32 0, %v1575
    %v1577 = vrot.slane %v1572, %v1576
    %v1579 = vmul.f32 %v1571, %v1577
    %v1580 = vld [vmem:[%s10] sm:$0x1]
    %v1581 = vmul.f32 %v1416, %v1579
    %v1583 = vlaneseq
    %v1584 = vshrl.u32 %v1583, 7
    %v1585 = vsub.s32 0, %v1584
    %v1586 = vrot.slane %v1580, %v1585
    %v1588 = vsub.f32 %v1586, %v1581
    %v1591 = vunpack.c.l.s4 1966171168
    %v1592 = vunpack.c.0.s8 %v1591
    %v1593 = vlaneseq
    %v1594 = vshrl.u32 %v1593, 7
    %v1595 = vsub.s32 %v1592, %v1594
    %v1596 = vrot.slane %v1579, %v1595
    %v1597 = vcombine.high %v1596, %v1596
    %v1599 = vunpack.c.l.s4 1966171168
    %v1600 = vunpack.c.0.s8 %v1599
    %v1601 = vlaneseq
    %v1602 = vshrl.u32 %v1601, 7
    %v1603 = vsub.s32 %v1600, %v1602
    %v1604 = vrot.slane %v1596, %v1603
    %v1606 = vunpack.c.l.s4 1966171168
    %v1607 = vunpack.c.0.s8 %v1606
    %v1608 = vlaneseq
    %v1609 = vshrl.u32 %v1608, 7
    %v1610 = vsub.s32 %v1607, %v1609
    %v1611 = vrot.slane %v1597, %v1610
    %v1612 = vlaneseq
    %v1613 = vshrl.u32 %v1612, 7
    %v1614 = vsub.s32 0, %v1613
    %v1615 = vrot.slane %v1604, %v1614
    %v1616 = vlaneseq
    %v1617 = vshrl.u32 %v1616, 7
    %v1618 = vsub.s32 0, %v1617
    %v1619 = vrot.slane %v1611, %v1618
    %v1622 = vmul.f32 %v1227, %v1615
    %v1623 = vmul.f32 %v1228, %v1615
    %v1624 = vmul.f32 %v1229, %v1619
    %v1625 = vmul.f32 %v1230, %v1619
    %v1628 = vunpack.c.l.s4 1966171168
    %v1629 = vunpack.c.0.s8 %v1628
    %v1630 = vlaneseq
    %v1631 = vshrl.u32 %v1630, 7
    %v1632 = vsub.s32 %v1629, %v1631
    %v1633 = vrot.slane %v1588, %v1632
    %v1634 = vcombine.high %v1633, %v1633
    %v1636 = vunpack.c.l.s4 1966171168
    %v1637 = vunpack.c.0.s8 %v1636
    %v1638 = vlaneseq
    %v1639 = vshrl.u32 %v1638, 7
    %v1640 = vsub.s32 %v1637, %v1639
    %v1641 = vrot.slane %v1633, %v1640
    %v1643 = vunpack.c.l.s4 1966171168
    %v1644 = vunpack.c.0.s8 %v1643
    %v1645 = vlaneseq
    %v1646 = vshrl.u32 %v1645, 7
    %v1647 = vsub.s32 %v1644, %v1646
    %v1648 = vrot.slane %v1634, %v1647
    %v1649 = vlaneseq
    %v1650 = vshrl.u32 %v1649, 7
    %v1651 = vsub.s32 0, %v1650
    %v1652 = vrot.slane %v1641, %v1651
    %v1653 = vlaneseq
    %v1654 = vshrl.u32 %v1653, 7
    %v1655 = vsub.s32 0, %v1654
    %v1656 = vrot.slane %v1648, %v1655
    %v1659 = vadd.f32 %v1622, %v1652
    %v1660 = vadd.f32 %v1623, %v1652
    %v1661 = vadd.f32 %v1624, %v1656
    %v1662 = vadd.f32 %v1625, %v1656
    %v1663 = vmin.f32 %v1659, 20.0
    %v1664 = vmin.f32 %v1660, 20.0
    %v1665 = vmin.f32 %v1661, 20.0
    %v1666 = vmin.f32 %v1662, 20.0
    %v1667 = vmul.f32 %v1663, 1.442695
    %v1668 = vpow.pop %v1667
    %v1669 = vmul.f32 %v1664, 1.442695
    %v1670 = vpow.pop %v1669
    %v1671 = vmul.f32 %v1665, 1.442695
    %v1672 = vpow.pop %v1671
    %v1673 = vmul.f32 %v1666, 1.442695
    %v1674 = vpow.pop %v1673
    %v1675 = vadd.f32 %v1668, 2.0
    %v1676 = vadd.f32 %v1670, 2.0
    %v1677 = vadd.f32 %v1672, 2.0
    %v1678 = vadd.f32 %v1674, 2.0
    %v1679 = vmul.f32 %v1668, %v1675
    %v1680 = vmul.f32 %v1670, %v1676
    %v1681 = vmul.f32 %v1672, %v1677
    %v1682 = vmul.f32 %v1674, %v1678
    %v1683 = vadd.f32 %v1679, 2.0
    %v1684 = vadd.f32 %v1680, 2.0
    %v1685 = vadd.f32 %v1681, 2.0
    %v1686 = vadd.f32 %v1682, 2.0
    %v1687 = vrcp.pop %v1683
    %v1688 = vrcp.pop %v1684
    %v1689 = vrcp.pop %v1685
    %v1690 = vrcp.pop %v1686
    %v1691 = vmul.f32 %v1679, %v1687
    %v1692 = vmul.f32 %v1680, %v1688
    %v1693 = vmul.f32 %v1681, %v1689
    %v1694 = vmul.f32 %v1682, %v1690
    %vm1695 = vcmp.gt.f32.partialorder %v1659, 20.0
    %vm1696 = vcmp.gt.f32.partialorder %v1660, 20.0
    %vm1697 = vcmp.gt.f32.partialorder %v1661, 20.0
    %vm1698 = vcmp.gt.f32.partialorder %v1662, 20.0
    %v1699 = vmul.f32 %v1659, %v1691
    %v1700 = vmul.f32 %v1660, %v1692
    %v1701 = vmul.f32 %v1661, %v1693
    %v1702 = vmul.f32 %v1662, %v1694
    %v1703 = vsel %vm1695, %v1659, %v1699
    %v1704 = vsel %vm1696, %v1660, %v1700
    %v1705 = vsel %vm1697, %v1661, %v1701
    %v1706 = vsel %vm1698, %v1662, %v1702
    %v1707 = vld [vmem:[%s11] sm:$0xf]
    %v1708 = vld [vmem:[%s12] sm:$0x1]
    %v1710 = vlaneseq
    %v1711 = vshrl.u32 %v1710, 7
    %v1712 = vsub.s32 0, %v1711
    %v1713 = vrot.slane %v1708, %v1712
    %v1716 = vsel %vm212, %v1707, 0
    %1718 = vmatprep.subr.bf16.mxu0 0
    %1719 = vmatpush1.bf16.msra.mxu0 0
    %1720 = vmatprep.subr.bf16.mxu0 0
    %1721 = vmatpush1.bf16.msra.mxu0 0
    %1722 = vmatprep.subr.bf16.mxu0 0
    %1723 = vmatpush1.bf16.msra.mxu0 0
    %1724 = vmatprep.subr.bf16.mxu0 0
    %1725 = vmatpush1.bf16.msra.mxu0 0
    %1726 = vmatprep.subr.bf16.mxu0 0
    %1727 = vmatpush1.bf16.msra.mxu0 0
    %1728 = vmatprep.subr.bf16.mxu0 0
    %1729 = vmatpush1.bf16.msra.mxu0 0
    %1730 = vmatprep.subr.bf16.mxu0 0
    %1731 = vmatpush1.bf16.msra.mxu0 0
    %1732 = vmatprep.subr.bf16.mxu0 0
    %1733 = vmatpush1.bf16.msra.mxu0 %v1716
    %1734 = vmatprep.subr.bf16.mxu0 0
    %1735 = vmatpush2.bf16.msra.mxu0 0
    %1736 = vmatprep.subr.bf16.mxu0 0
    %1737 = vmatpush2.bf16.msra.mxu0 0
    %1738 = vmatprep.subr.bf16.mxu0 0
    %1739 = vmatpush2.bf16.msra.mxu0 0
    %1740 = vmatprep.subr.bf16.mxu0 0
    %1741 = vmatpush2.bf16.msra.mxu0 0
    %1742 = vmatprep.subr.bf16.mxu0 0
    %1743 = vmatpush2.bf16.msra.mxu0 0
    %1744 = vmatprep.subr.bf16.mxu0 0
    %1745 = vmatpush2.bf16.msra.mxu0 0
    %1746 = vmatprep.subr.bf16.mxu0 0
    %1747 = vmatpush2.bf16.msra.mxu0 0
    %1748 = vmatprep.subr.bf16.mxu0 0
    %1749 = vmatpush2.bf16.msra.mxu0 0
    %1750 = vmatprep.mubr.bf16.mxu0 0
    %1751 = vmatmul.mubr.bf16.gmra.mxu0 %v207
    %v1752 = vpop.f32.mrf.mxu0
    %v1753 = vadd.f32 %v1713, %v1752
    %v1754 = vpop.f32.mrf.mxu0
    %v1755 = vpop.f32.mrf.mxu0
    %v1756 = vadd.f32 %v1713, %v1755
    %v1757 = vpop.f32.mrf.mxu0
    %1758 = vmatprep.mubr.bf16.mxu0 0
    %1759 = vmatmul.mubr.bf16.gmra.mxu0 %v210
    %v1760 = vpop.f32.mrf.mxu0
    %v1761 = vadd.f32 %v1713, %v1760
    %v1762 = vpop.f32.mrf.mxu0
    %v1763 = vpop.f32.mrf.mxu0
    %v1764 = vadd.f32 %v1713, %v1763
    %v1765 = vpop.f32.mrf.mxu0
    %1766 = vdwg.mxu0
    %v1767 = vadd.f32 %v1703, %v1753
    %v1768 = vadd.f32 %v1704, %v1756
    %v1769 = vadd.f32 %v1705, %v1761
    %v1770 = vadd.f32 %v1706, %v1764
    %1771 = vst.msk [vmem:[%s15] sm:$0xff] %vm435, %v1767
    %1772 = vst.msk [vmem:[%s15 + $0x8] sm:$0xff] %vm435, %v1768
    %1773 = vst.msk [vmem:[%s15 + $0x10] sm:$0xff] %vm435, %v1769
    %1774 = vst.msk [vmem:[%s15 + $0x18] sm:$0xff] %vm435, %v1770
    // Predicated region
    $region82: #{tpu_custom_call.1} parent=1 // pred_check
      _
    $region83: #{tpu_custom_call.1} parent=1 // pred_check_branch
      %1776 = sbr.rel (0) target = $region85
    $region84: #{tpu_custom_call.1} parent=1 // pred_region
      _
    $region85: #{tpu_custom_call.1} parent=1 // pred_fallthru
      _
    // Predicated region
    $region86: #{tpu_custom_call.1} parent=1 // pred_check
      _
    $region87: #{tpu_custom_call.1} parent=1 // pred_check_branch
      %1778 = sbr.rel (0) target = $region89
    $region88: #{tpu_custom_call.1} parent=1 // pred_region
      _
    $region89: #{tpu_custom_call.1} parent=1 // pred_fallthru
      _
    %1779 = vsyncpa [#allocation3], 1
    %1780 = vsyncpa [#allocation5], 1
    %1781 = vsyncpa [#allocation8], 1

</llo_original>
